<compile_context>
chip_gen: v7x
topology: tpu7x:2x2x1
jax: 0.10.0
libtpu: 0.0.40
codegen_flags: <defaults>
</compile_context>

<pallas_src>
import functools

import jax
import jax.numpy as jnp
from jax.experimental import pallas as pl
from jax.experimental.pallas import tpu as pltpu

EPS = 1e-5
NUM_GROUPS = 8


# -------------------------------- the kernel ------------------------------- #
def _wavenet_kernel(dils_ref, x_ref, cin_w_ref, cin_b_ref, fg_w_ref, pw_ref,
                    mg_r_ref, mg_b_ref, sl_r_ref, sl_b_ref,
                    out_ref, h_ref, res_ref, skip_ref, *, seg_len, conv_dtype):
    layer = pl.program_id(1)
    n_layers = pl.num_programs(1)
    C, LT = out_ref.shape                        # LT = batch_tile * L

    # per-segment lane position, one (1, LT) row rebuilt per grid step (cheap)
    pos = jax.lax.broadcasted_iota(jnp.int32, (1, LT), 1) % seg_len

    def shift(v, amt, mask):
        # out[:, l] = v[:, l - amt] (mod LT), zeroed outside the batch segment.
        return pltpu.roll(v, shift=amt, axis=1) * mask

    def seg_group_mean(u):
        # per-(batch segment, channel group) mean, broadcast back to (C, LT)
        s = jnp.dot(u, sl_r_ref[...], preferred_element_type=jnp.float32)      # (C, BT)
        s = jnp.dot(mg_r_ref[...], s, preferred_element_type=jnp.float32)      # (G, BT)
        s = jnp.dot(mg_b_ref[...], s, preferred_element_type=jnp.float32)      # (C, BT)
        return jnp.dot(s, sl_b_ref[...], preferred_element_type=jnp.float32)   # (C, LT)

    def group_norm(v):
        # F.group_norm(v, NUM_GROUPS), no affine, per batch segment (f32 stats)
        mean = seg_group_mean(v)
        diff = v - mean
        var = seg_group_mean(diff * diff)
        return diff * jax.lax.rsqrt(var + EPS)

    # -------- first depth step only: conv_in (kernel 3, dil 1, bias) -------- #
    @pl.when(layer == 0)
    def _():
        x = x_ref[...]                            # (Cin, LT) f32
        mf1 = (pos >= 1).astype(jnp.float32)
        mb1 = (pos < seg_len - 1).astype(jnp.float32)
        w = cin_w_ref[...]                        # (3, C, Cin); k=0 pairs with x[l-1]
        h0 = (jnp.dot(w[1], x, preferred_element_type=jnp.float32)
              + jnp.dot(w[0], shift(x, 1, mf1), preferred_element_type=jnp.float32)
              + jnp.dot(w[2], shift(x, LT - 1, mb1), preferred_element_type=jnp.float32)
              + cin_b_ref[...])
        h_ref[...] = h0
        res_ref[...] = h0
        skip_ref[...] = jnp.zeros_like(skip_ref)

    # -------- this depth step's ConvBlock (dilation = dils[layer]) ---------- #
    d = dils_ref[layer]                           # dynamic dilation (SMEM scalar)
    fwd = jnp.where(d < LT, d, 0)                 # roll amount for h[l - d]
    bwd = jnp.where(d < LT, LT - d, 0)            # roll amount for h[l + d]
    mf = (pos >= d).astype(jnp.float32)           # masks built per layer, (1, LT)
    mb = (pos < seg_len - d).astype(jnp.float32)

    h = h_ref[...]
    # Three dilation taps stacked into the contraction dim -> single fused
    # filter+gate matmul (2C, 3C) @ (3C, LT).  (On v7x three (2C, C)@(C, LT)
    # dots would skip this copy; fused form kept since it fills the systolic
    # depth better for C < 128.)
    h3 = jnp.concatenate([shift(h, fwd, mf), h, shift(h, bwd, mb)],
                         axis=0).astype(conv_dtype)
    fg = jnp.dot(fg_w_ref[0], h3, preferred_element_type=jnp.float32)   # (2C, LT)
    gated = (jnp.tanh(fg[:C]) * jax.nn.sigmoid(fg[C:])).astype(conv_dtype)
    hn = jnp.dot(pw_ref[0], gated, preferred_element_type=jnp.float32)  # (C, LT)

    res = group_norm(res_ref[...] + hn)
    h_ref[...] = hn                               # next block consumes this conv output
    res_ref[...] = res
    skip_ref[...] = skip_ref[...] + res

    @pl.when(layer == n_layers - 1)
    def _():
        out_ref[...] = group_norm(skip_ref[...]).astype(out_ref.dtype)


# --------------------------------- wrapper --------------------------------- #
def _default_batch_tile(batch, min_steps=4):
    """Largest divisor of `batch` that still leaves >= min_steps grid steps."""
    best = 1
    for t in range(1, batch + 1):
        if batch % t == 0 and batch // t >= min_steps:
            best = t
    return best


def wavenet_block(x, params, depth, *, batch_tile=None, conv_dtype=jnp.float32):
    B, Cin, L = x.shape
    C = params["cin_w"].shape[1]
    assert C % NUM_GROUPS == 0
    gs = C // NUM_GROUPS

    if batch_tile is None:
        batch_tile = _default_batch_tile(B)       # keep >= 4 grid steps when B allows
    assert B % batch_tile == 0
    nb = B // batch_tile
    LT = batch_tile * L

    # ---- host-side layout plumbing (stays outside the kernel) ----
    # activations: (B, Cin, L) -> lane-dense (Cin, B*L)
    x2 = jnp.transpose(x, (1, 0, 2)).reshape(Cin, B * L)
    # fused filter+gate weights (streamed per layer): (depth, 3, C, C) ->
    # (depth, C, 3C), taps [k0|k1|k2] flattened into the contraction dim to
    # match the tap stack [h[l-d]; h[l]; h[l+d]]; rows [filter ; gate].
    fw = jnp.transpose(params["filt_w"], (0, 2, 1, 3)).reshape(depth, C, 3 * C)
    gw = jnp.transpose(params["gate_w"], (0, 2, 1, 3)).reshape(depth, C, 3 * C)
    fg_w = jnp.concatenate([fw, gw], axis=1).astype(conv_dtype)       # (depth, 2C, 3C)
    pt_w = params["point_w"].astype(conv_dtype)                       # (depth, C, C)
    # low-rank group-norm factors (replace the old dense (LT, LT) operand)
    gid = jnp.arange(C) // gs
    grng = jnp.arange(NUM_GROUPS)
    mg_r = (grng[:, None] == gid[None, :]).astype(jnp.float32) / gs   # (G, C)  reduce
    mg_b = (gid[:, None] == grng[None, :]).astype(jnp.float32)        # (C, G)  broadcast
    sid = jnp.arange(LT) // L
    srng = jnp.arange(batch_tile)
    sl_r = (sid[:, None] == srng[None, :]).astype(jnp.float32) / L    # (LT, BT) reduce
    sl_b = (srng[:, None] == sid[None, :]).astype(jnp.float32)        # (BT, LT) broadcast
    # per-layer dilations, scalar-prefetched to SMEM
    dils = jnp.array([2 ** i for i in range(depth)], jnp.int32)

    def const_spec(shape):
        n = len(shape)
        return pl.BlockSpec(shape, lambda b, l, *_, _n=n: (0,) * _n)

    # explicit VMEM budget (v5e default scoped limit is only 16 MiB)
    wsz = int(jnp.dtype(conv_dtype).itemsize)
    act = C * LT * 4
    est_vmem = (3 * act                                        # h/res/skip scratch
                + 2 * (Cin * LT * 4 + act)                     # x + out blocks
                + 2 * 7 * C * C * wsz                          # streamed weight blocks
                + 2 * (3 * C * Cin + C + 2 * NUM_GROUPS * C
                       + 2 * LT * batch_tile) * 4              # small constants
                + 8 * act)                                     # temporaries headroom
    vmem_limit = int(min(max(2 * est_vmem, 16 << 20), 100 << 20))

    kernel = functools.partial(_wavenet_kernel, seg_len=L, conv_dtype=conv_dtype)
    out2 = pl.pallas_call(
        kernel,
        out_shape=jax.ShapeDtypeStruct((C, B * L), jnp.float32),
        grid_spec=pltpu.PrefetchScalarGridSpec(
            num_scalar_prefetch=1,
            grid=(nb, depth),
            in_specs=[
                pl.BlockSpec((Cin, LT), lambda b, l, *_: (0, b)),   # activations
                const_spec((3, C, Cin)),                            # conv_in weight
                const_spec((C, 1)),                                 # conv_in bias
                pl.BlockSpec((1, 2 * C, 3 * C), lambda b, l, *_: (l, 0, 0)),  # fg weights (streamed)
                pl.BlockSpec((1, C, C), lambda b, l, *_: (l, 0, 0)),          # 1x1 weights (streamed)
                const_spec((NUM_GROUPS, C)),                        # group reduce
                const_spec((C, NUM_GROUPS)),                        # group broadcast
                const_spec((LT, batch_tile)),                       # segment reduce
                const_spec((batch_tile, LT)),                       # segment broadcast
            ],
            out_specs=pl.BlockSpec((C, LT), lambda b, l, *_: (0, b)),
            scratch_shapes=[pltpu.VMEM((C, LT), jnp.float32)] * 3,  # h, res, skip
        ),
        compiler_params=pltpu.CompilerParams(
            dimension_semantics=("parallel", "arbitrary"),
            vmem_limit_bytes=vmem_limit),
    )(dils, x2, params["cin_w"], params["cin_b"], fg_w, pt_w,
      mg_r, mg_b, sl_r, sl_b)

    return jnp.transpose(out2.reshape(C, B, L), (1, 0, 2))            # -> (B, C, L)


# --------------------------- pure-JAX reference ---------------------------- #
def ref_forward(x, params, depth):
    def conv3(h, w, d):                                  # w: (3, Cout, Cin)
        w_oik = jnp.transpose(w, (1, 2, 0))              # (Cout, Cin, K)
        return jax.lax.conv_general_dilated(
            h, w_oik, window_strides=(1,), padding=[(d, d)],
            rhs_dilation=(d,), dimension_numbers=("NCH", "OIH", "NCH"))

    def gn(h):
        B, C, L = h.shape
        hg = h.reshape(B, NUM_GROUPS, C // NUM_GROUPS, L)
        m = hg.mean(axis=(2, 3), keepdims=True)
        v = ((hg - m) ** 2).mean(axis=(2, 3), keepdims=True)
        return ((hg - m) * jax.lax.rsqrt(v + EPS)).reshape(B, C, L)

    h = conv3(x, params["cin_w"], 1) + params["cin_b"][None, :, :]
    res = h
    skip = jnp.zeros_like(h)
    for i in range(depth):
        d = 2 ** i
        f = conv3(h, params["filt_w"][i], d)
        g = conv3(h, params["gate_w"][i], d)
        h = jnp.einsum("oc,bcl->bol", params["point_w"][i],
                       jnp.tanh(f) * jax.nn.sigmoid(g))
        res = gn(res + h)
        skip = skip + res
    return gn(skip)


# ----------------------------------- main ----------------------------------- #
if __name__ == "__main__":
    B, C_IN, C_OUT, L, DEPTH = 2, 4, 16, 128, 3   # C_OUT divisible by 8 groups

    key = jax.random.PRNGKey(0)
    ks = jax.random.split(key, 6)
    scale = 0.1
    x = jax.random.normal(ks[0], (B, C_IN, L), jnp.float32)
    params = dict(
        cin_w=jax.random.normal(ks[1], (3, C_OUT, C_IN), jnp.float32) * scale,
        cin_b=jax.random.normal(ks[2], (C_OUT, 1), jnp.float32) * scale,
        filt_w=jax.random.normal(ks[3], (DEPTH, 3, C_OUT, C_OUT), jnp.float32) * scale,
        gate_w=jax.random.normal(ks[4], (DEPTH, 3, C_OUT, C_OUT), jnp.float32) * scale,
        point_w=jax.random.normal(ks[5], (DEPTH, C_OUT, C_OUT), jnp.float32) * scale,
    )

    ref = ref_forward(x, params, DEPTH)

    # default tiling (f32 conv matmuls) -- must match the f32 reference tightly
    out = wavenet_block(x, params, DEPTH)
    jax.block_until_ready(out)
    err = float(jnp.max(jnp.abs(out - ref)))
    assert err < 1e-3, f"mismatch (default): max abs err = {err}"

    # batch folded into lanes (exercises multi-segment group-norm / shift masks)
    out_folded = wavenet_block(x, params, DEPTH, batch_tile=B)
    jax.block_until_ready(out_folded)
    err = float(jnp.max(jnp.abs(out_folded - ref)))
    assert err < 1e-3, f"mismatch (batch_tile=B): max abs err = {err}"

    # bf16 filter/gate + 1x1 matmuls (f32 accumulation + f32 group-norm stats)
    out_bf16 = wavenet_block(x, params, DEPTH, conv_dtype=jnp.bfloat16)
    jax.block_until_ready(out_bf16)
    err = float(jnp.max(jnp.abs(out_bf16 - ref)))
    assert err < 1e-1, f"mismatch (bf16 convs): max abs err = {err}"

    print("KERNEL_OK")
</pallas_src>

<mosaic_0001>
module attributes {stable_mosaic.version = 11 : i64} {
  func.func @_wavenet_kernel(%arg0: i32, %arg1: i32, %arg2: memref<3xi32, #tpu.memory_space<smem>>, %arg3: memref<4x128xf32, #tpu.memory_space<vmem>>, %arg4: memref<3x16x4xf32, #tpu.memory_space<vmem>>, %arg5: memref<16x1xf32, #tpu.memory_space<vmem>>, %arg6: memref<1x32x48xf32, #tpu.memory_space<vmem>>, %arg7: memref<1x16x16xf32, #tpu.memory_space<vmem>>, %arg8: memref<8x16xf32, #tpu.memory_space<vmem>>, %arg9: memref<16x8xf32, #tpu.memory_space<vmem>>, %arg10: memref<128x1xf32, #tpu.memory_space<vmem>>, %arg11: memref<1x128xf32, #tpu.memory_space<vmem>>, %arg12: memref<16x128xf32, #tpu.memory_space<vmem>>, %arg13: memref<16x128xf32, #tpu.memory_space<vmem>>, %arg14: memref<16x128xf32, #tpu.memory_space<vmem>>, %arg15: memref<16x128xf32, #tpu.memory_space<vmem>>) attributes {dimension_semantics = [#tpu.dimension_semantics<parallel>, #tpu.dimension_semantics<arbitrary>], iteration_bounds = array<i64: 2, 3>, scalar_prefetch = 1 : i64, scratch_operands = 3 : i64, tpu.core_type = #tpu.core_type<tc>, window_params = [{transform_indices = @transform_0, window_bounds = array<i64: 4, 128>}, {pipeline_mode = #tpu.pipeline_mode<synchronous>, transform_indices = @transform_1, window_bounds = array<i64: 3, 16, 4>}, {pipeline_mode = #tpu.pipeline_mode<synchronous>, transform_indices = @transform_2, window_bounds = array<i64: 16, 1>}, {transform_indices = @transform_3, window_bounds = array<i64: 1, 32, 48>}, {transform_indices = @transform_4, window_bounds = array<i64: 1, 16, 16>}, {pipeline_mode = #tpu.pipeline_mode<synchronous>, transform_indices = @transform_5, window_bounds = array<i64: 8, 16>}, {pipeline_mode = #tpu.pipeline_mode<synchronous>, transform_indices = @transform_6, window_bounds = array<i64: 16, 8>}, {pipeline_mode = #tpu.pipeline_mode<synchronous>, transform_indices = @transform_7, window_bounds = array<i64: 128, 1>}, {pipeline_mode = #tpu.pipeline_mode<synchronous>, transform_indices = @transform_8, window_bounds = array<i64: 1, 128>}, {transform_indices = @transform_9, window_bounds = array<i64: 16, 128>}]} {
    %0 = tpu.iota {dimensions = array<i32: 1>} : vector<1x128xi32>
    %c128_i32 = arith.constant 128 : i32
    %c0_i32 = arith.constant 0 : i32
    %1 = arith.cmpi eq, %c128_i32, %c0_i32 : i32
    %c1_i32 = arith.constant 1 : i32
    %2 = arith.select %1, %c1_i32, %c128_i32 : i32
    %3 = vector.broadcast %2 : i32 to vector<1x128xi32>
    %4 = arith.remsi %0, %3 : vector<1x128xi32>
    %c0_i32_0 = arith.constant 0 : i32
    %5 = vector.broadcast %c0_i32_0 : i32 to vector<1x128xi32>
    %6 = arith.cmpi ne, %4, %5 : vector<1x128xi32>
    %c0_i32_1 = arith.constant 0 : i32
    %7 = vector.broadcast %c0_i32_1 : i32 to vector<1x128xi32>
    %8 = arith.cmpi slt, %4, %7 : vector<1x128xi32>
    %c0_i32_2 = arith.constant 0 : i32
    %9 = arith.cmpi slt, %2, %c0_i32_2 : i32
    %10 = vector.broadcast %9 : i1 to vector<1x128xi1>
    %11 = vector.broadcast %10 : vector<1x128xi1> to vector<1x128xi1>
    %12 = arith.xori %8, %11 : vector<1x128xi1>
    %13 = arith.andi %12, %6 : vector<1x128xi1>
    %14 = vector.broadcast %2 : i32 to vector<1x128xi32>
    %15 = arith.addi %4, %14 : vector<1x128xi32>
    %16 = arith.select %13, %15, %4 : vector<1x128xi1>, vector<1x128xi32>
    %c0_i32_3 = arith.constant 0 : i32
    %17 = arith.cmpi eq, %arg1, %c0_i32_3 : i32
    %18 = arith.extui %17 : i1 to i32
    %c0_i32_4 = arith.constant 0 : i32
    %19 = arith.cmpi ne, %18, %c0_i32_4 : i32
    scf.if %19 {
      %c0_56 = arith.constant 0 : index
      %c0_57 = arith.constant 0 : index
      %91 = vector.load %arg3[%c0_56, %c0_57] : memref<4x128xf32, #tpu.memory_space<vmem>>, vector<4x128xf32>
      %c1_i32_58 = arith.constant 1 : i32
      %92 = vector.broadcast %c1_i32_58 : i32 to vector<1x128xi32>
      %93 = arith.cmpi sge, %16, %92 : vector<1x128xi32>
      %94 = arith.extui %93 : vector<1x128xi1> to vector<1x128xi32>
      %95 = arith.sitofp %94 : vector<1x128xi32> to vector<1x128xf32>
      %c127_i32 = arith.constant 127 : i32
      %96 = vector.broadcast %c127_i32 : i32 to vector<1x128xi32>
      %97 = arith.cmpi slt, %16, %96 : vector<1x128xi32>
      %98 = arith.extui %97 : vector<1x128xi1> to vector<1x128xi32>
      %99 = arith.sitofp %98 : vector<1x128xi32> to vector<1x128xf32>
      %c0_59 = arith.constant 0 : index
      %c0_60 = arith.constant 0 : index
      %c0_61 = arith.constant 0 : index
      %100 = vector.load %arg4[%c0_59, %c0_60, %c0_61] : memref<3x16x4xf32, #tpu.memory_space<vmem>>, vector<3x16x4xf32>
      %101 = vector.extract_strided_slice %100 {offsets = [1, 0, 0], sizes = [1, 16, 4], strides = [1, 1, 1]} : vector<3x16x4xf32> to vector<1x16x4xf32>
      %102 = vector.shape_cast %101 : vector<1x16x4xf32> to vector<16x4xf32>
      %cst_62 = arith.constant dense<0.000000e+00> : vector<16x128xf32>
      %103 = tpu.matmul %102, %91, %cst_62 {dimension_numbers = #tpu.dot_dimension_numbers<[1], [0], [0], [1], [0, 0, 1, 1], [], []>} : vector<16x4xf32>, vector<4x128xf32>, vector<16x128xf32> -> vector<16x128xf32>
      %104 = vector.extract_strided_slice %100 {offsets = [0, 0, 0], sizes = [1, 16, 4], strides = [1, 1, 1]} : vector<3x16x4xf32> to vector<1x16x4xf32>
      %105 = vector.shape_cast %104 : vector<1x16x4xf32> to vector<16x4xf32>
      %c1_i32_63 = arith.constant 1 : i32
      %106 = tpu.dynamic_rotate %91 by %c1_i32_63 dim 1 : vector<4x128xf32>, i32 -> vector<4x128xf32>
      %107 = vector.broadcast %95 : vector<1x128xf32> to vector<4x128xf32>
      %108 = arith.mulf %106, %107 : vector<4x128xf32>
      %cst_64 = arith.constant dense<0.000000e+00> : vector<16x128xf32>
      %109 = tpu.matmul %105, %108, %cst_64 {dimension_numbers = #tpu.dot_dimension_numbers<[1], [0], [0], [1], [0, 0, 1, 1], [], []>} : vector<16x4xf32>, vector<4x128xf32>, vector<16x128xf32> -> vector<16x128xf32>
      %110 = arith.addf %103, %109 : vector<16x128xf32>
      %111 = vector.extract_strided_slice %100 {offsets = [2, 0, 0], sizes = [1, 16, 4], strides = [1, 1, 1]} : vector<3x16x4xf32> to vector<1x16x4xf32>
      %112 = vector.shape_cast %111 : vector<1x16x4xf32> to vector<16x4xf32>
      %c127_i32_65 = arith.constant 127 : i32
      %113 = tpu.dynamic_rotate %91 by %c127_i32_65 dim 1 : vector<4x128xf32>, i32 -> vector<4x128xf32>
      %114 = vector.broadcast %99 : vector<1x128xf32> to vector<4x128xf32>
      %115 = arith.mulf %113, %114 : vector<4x128xf32>
      %cst_66 = arith.constant dense<0.000000e+00> : vector<16x128xf32>
      %116 = tpu.matmul %112, %115, %cst_66 {dimension_numbers = #tpu.dot_dimension_numbers<[1], [0], [0], [1], [0, 0, 1, 1], [], []>} : vector<16x4xf32>, vector<4x128xf32>, vector<16x128xf32> -> vector<16x128xf32>
      %117 = arith.addf %110, %116 : vector<16x128xf32>
      %c0_67 = arith.constant 0 : index
      %c0_68 = arith.constant 0 : index
      %118 = vector.load %arg5[%c0_67, %c0_68] : memref<16x1xf32, #tpu.memory_space<vmem>>, vector<16x1xf32>
      %119 = vector.broadcast %118 : vector<16x1xf32> to vector<16x128xf32>
      %120 = arith.addf %117, %119 : vector<16x128xf32>
      %c0_69 = arith.constant 0 : index
      %c0_70 = arith.constant 0 : index
      %121 = vector.load %arg13[%c0_69, %c0_70] : memref<16x128xf32, #tpu.memory_space<vmem>>, vector<16x128xf32>
      tpu.vector_store %arg13[%c0_69, %c0_70], %120 {strides = array<i32>} : memref<16x128xf32, #tpu.memory_space<vmem>>, vector<16x128xf32>,
      %c0_71 = arith.constant 0 : index
      %c0_72 = arith.constant 0 : index
      %122 = vector.load %arg14[%c0_71, %c0_72] : memref<16x128xf32, #tpu.memory_space<vmem>>, vector<16x128xf32>
      tpu.vector_store %arg14[%c0_71, %c0_72], %120 {strides = array<i32>} : memref<16x128xf32, #tpu.memory_space<vmem>>, vector<16x128xf32>,
      %cst_73 = arith.constant 0.000000e+00 : f32
      %123 = vector.broadcast %cst_73 : f32 to vector<16x128xf32>
      %c0_74 = arith.constant 0 : index
      %c0_75 = arith.constant 0 : index
      %124 = vector.load %arg15[%c0_74, %c0_75] : memref<16x128xf32, #tpu.memory_space<vmem>>, vector<16x128xf32>
      tpu.vector_store %arg15[%c0_74, %c0_75], %123 {strides = array<i32>} : memref<16x128xf32, #tpu.memory_space<vmem>>, vector<16x128xf32>,
    } else {
    }
    %20 = arith.index_cast %arg1 : i32 to index
    %21 = memref.load %arg2[%20] : memref<3xi32, #tpu.memory_space<smem>>
    %c128_i32_5 = arith.constant 128 : i32
    %22 = arith.cmpi slt, %21, %c128_i32_5 : i32
    %c0_i32_6 = arith.constant 0 : i32
    %23 = arith.select %22, %21, %c0_i32_6 : i32
    %c128_i32_7 = arith.constant 128 : i32
    %24 = arith.cmpi slt, %21, %c128_i32_7 : i32
    %c128_i32_8 = arith.constant 128 : i32
    %25 = arith.subi %c128_i32_8, %21 : i32
    %c0_i32_9 = arith.constant 0 : i32
    %26 = arith.select %24, %25, %c0_i32_9 : i32
    %27 = vector.broadcast %21 : i32 to vector<1x128xi32>
    %28 = arith.cmpi sge, %16, %27 : vector<1x128xi32>
    %29 = arith.extui %28 : vector<1x128xi1> to vector<1x128xi32>
    %30 = arith.sitofp %29 : vector<1x128xi32> to vector<1x128xf32>
    %c128_i32_10 = arith.constant 128 : i32
    %31 = arith.subi %c128_i32_10, %21 : i32
    %32 = vector.broadcast %31 : i32 to vector<1x128xi32>
    %33 = arith.cmpi slt, %16, %32 : vector<1x128xi32>
    %34 = arith.extui %33 : vector<1x128xi1> to vector<1x128xi32>
    %35 = arith.sitofp %34 : vector<1x128xi32> to vector<1x128xf32>
    %c0 = arith.constant 0 : index
    %c0_11 = arith.constant 0 : index
    %36 = vector.load %arg13[%c0, %c0_11] : memref<16x128xf32, #tpu.memory_space<vmem>>, vector<16x128xf32>
    %37 = tpu.dynamic_rotate %36 by %23 dim 1 : vector<16x128xf32>, i32 -> vector<16x128xf32>
    %38 = vector.broadcast %30 : vector<1x128xf32> to vector<16x128xf32>
    %39 = arith.mulf %37, %38 : vector<16x128xf32>
    %40 = tpu.dynamic_rotate %36 by %26 dim 1 : vector<16x128xf32>, i32 -> vector<16x128xf32>
    %41 = vector.broadcast %35 : vector<1x128xf32> to vector<16x128xf32>
    %42 = arith.mulf %40, %41 : vector<16x128xf32>
    %43 = tpu.concatenate %39, %36, %42 in 0 : vector<16x128xf32>, vector<16x128xf32>, vector<16x128xf32> -> vector<48x128xf32>
    %c0_12 = arith.constant 0 : index
    %c0_13 = arith.constant 0 : index
    %c0_14 = arith.constant 0 : index
    %44 = vector.load %arg6[%c0_12, %c0_13, %c0_14] : memref<1x32x48xf32, #tpu.memory_space<vmem>>, vector<1x32x48xf32>
    %45 = vector.shape_cast %44 : vector<1x32x48xf32> to vector<32x48xf32>
    %cst = arith.constant dense<0.000000e+00> : vector<32x128xf32>
    %46 = tpu.matmul %45, %43, %cst {dimension_numbers = #tpu.dot_dimension_numbers<[1], [0], [0], [1], [0, 0, 1, 1], [], []>} : vector<32x48xf32>, vector<48x128xf32>, vector<32x128xf32> -> vector<32x128xf32>
    %47 = vector.extract_strided_slice %46 {offsets = [0, 0], sizes = [16, 128], strides = [1, 1]} : vector<32x128xf32> to vector<16x128xf32>
    %48 = math.tanh %47 : vector<16x128xf32>
    %49 = vector.extract_strided_slice %46 {offsets = [16, 0], sizes = [16, 128], strides = [1, 1]} : vector<32x128xf32> to vector<16x128xf32>
    %50 = arith.negf %49 : vector<16x128xf32>
    %51 = math.exp %50 : vector<16x128xf32>
    %cst_15 = arith.constant 1.000000e+00 : f32
    %52 = vector.broadcast %cst_15 : f32 to vector<16x128xf32>
    %53 = arith.addf %52, %51 : vector<16x128xf32>
    %54 = arith.divf %52, %53 : vector<16x128xf32>
    %55 = arith.mulf %48, %54 : vector<16x128xf32>
    %c0_16 = arith.constant 0 : index
    %c0_17 = arith.constant 0 : index
    %c0_18 = arith.constant 0 : index
    %56 = vector.load %arg7[%c0_16, %c0_17, %c0_18] : memref<1x16x16xf32, #tpu.memory_space<vmem>>, vector<1x16x16xf32>
    %57 = vector.shape_cast %56 : vector<1x16x16xf32> to vector<16x16xf32>
    %cst_19 = arith.constant dense<0.000000e+00> : vector<16x128xf32>
    %58 = tpu.matmul %57, %55, %cst_19 {dimension_numbers = #tpu.dot_dimension_numbers<[1], [0], [0], [1], [0, 0, 1, 1], [], []>} : vector<16x16xf32>, vector<16x128xf32>, vector<16x128xf32> -> vector<16x128xf32>
    %c0_20 = arith.constant 0 : index
    %c0_21 = arith.constant 0 : index
    %59 = vector.load %arg14[%c0_20, %c0_21] : memref<16x128xf32, #tpu.memory_space<vmem>>, vector<16x128xf32>
    %60 = arith.addf %59, %58 : vector<16x128xf32>
    %c0_22 = arith.constant 0 : index
    %c0_23 = arith.constant 0 : index
    %61 = vector.load %arg10[%c0_22, %c0_23] : memref<128x1xf32, #tpu.memory_space<vmem>>, vector<128x1xf32>
    %cst_24 = arith.constant dense<0.000000e+00> : vector<16x1xf32>
    %62 = tpu.matmul %60, %61, %cst_24 {dimension_numbers = #tpu.dot_dimension_numbers<[1], [0], [0], [1], [0, 0, 1, 1], [], []>} : vector<16x128xf32>, vector<128x1xf32>, vector<16x1xf32> -> vector<16x1xf32>
    %c0_25 = arith.constant 0 : index
    %c0_26 = arith.constant 0 : index
    %63 = vector.load %arg8[%c0_25, %c0_26] : memref<8x16xf32, #tpu.memory_space<vmem>>, vector<8x16xf32>
    %cst_27 = arith.constant dense<0.000000e+00> : vector<8x1xf32>
    %64 = tpu.matmul %63, %62, %cst_27 {dimension_numbers = #tpu.dot_dimension_numbers<[1], [0], [0], [1], [0, 0, 1, 1], [], []>} : vector<8x16xf32>, vector<16x1xf32>, vector<8x1xf32> -> vector<8x1xf32>
    %c0_28 = arith.constant 0 : index
    %c0_29 = arith.constant 0 : index
    %65 = vector.load %arg9[%c0_28, %c0_29] : memref<16x8xf32, #tpu.memory_space<vmem>>, vector<16x8xf32>
    %cst_30 = arith.constant dense<0.000000e+00> : vector<16x1xf32>
    %66 = tpu.matmul %65, %64, %cst_30 {dimension_numbers = #tpu.dot_dimension_numbers<[1], [0], [0], [1], [0, 0, 1, 1], [], []>} : vector<16x8xf32>, vector<8x1xf32>, vector<16x1xf32> -> vector<16x1xf32>
    %c0_31 = arith.constant 0 : index
    %c0_32 = arith.constant 0 : index
    %67 = vector.load %arg11[%c0_31, %c0_32] : memref<1x128xf32, #tpu.memory_space<vmem>>, vector<1x128xf32>
    %cst_33 = arith.constant dense<0.000000e+00> : vector<16x128xf32>
    %68 = tpu.matmul %66, %67, %cst_33 {dimension_numbers = #tpu.dot_dimension_numbers<[1], [0], [0], [1], [0, 0, 1, 1], [], []>} : vector<16x1xf32>, vector<1x128xf32>, vector<16x128xf32> -> vector<16x128xf32>
    %69 = arith.subf %60, %68 : vector<16x128xf32>
    %70 = arith.mulf %69, %69 : vector<16x128xf32>
    %c0_34 = arith.constant 0 : index
    %c0_35 = arith.constant 0 : index
    %71 = vector.load %arg10[%c0_34, %c0_35] : memref<128x1xf32, #tpu.memory_space<vmem>>, vector<128x1xf32>
    %cst_36 = arith.constant dense<0.000000e+00> : vector<16x1xf32>
    %72 = tpu.matmul %70, %71, %cst_36 {dimension_numbers = #tpu.dot_dimension_numbers<[1], [0], [0], [1], [0, 0, 1, 1], [], []>} : vector<16x128xf32>, vector<128x1xf32>, vector<16x1xf32> -> vector<16x1xf32>
    %c0_37 = arith.constant 0 : index
    %c0_38 = arith.constant 0 : index
    %73 = vector.load %arg8[%c0_37, %c0_38] : memref<8x16xf32, #tpu.memory_space<vmem>>, vector<8x16xf32>
    %cst_39 = arith.constant dense<0.000000e+00> : vector<8x1xf32>
    %74 = tpu.matmul %73, %72, %cst_39 {dimension_numbers = #tpu.dot_dimension_numbers<[1], [0], [0], [1], [0, 0, 1, 1], [], []>} : vector<8x16xf32>, vector<16x1xf32>, vector<8x1xf32> -> vector<8x1xf32>
    %c0_40 = arith.constant 0 : index
    %c0_41 = arith.constant 0 : index
    %75 = vector.load %arg9[%c0_40, %c0_41] : memref<16x8xf32, #tpu.memory_space<vmem>>, vector<16x8xf32>
    %cst_42 = arith.constant dense<0.000000e+00> : vector<16x1xf32>
    %76 = tpu.matmul %75, %74, %cst_42 {dimension_numbers = #tpu.dot_dimension_numbers<[1], [0], [0], [1], [0, 0, 1, 1], [], []>} : vector<16x8xf32>, vector<8x1xf32>, vector<16x1xf32> -> vector<16x1xf32>
    %c0_43 = arith.constant 0 : index
    %c0_44 = arith.constant 0 : index
    %77 = vector.load %arg11[%c0_43, %c0_44] : memref<1x128xf32, #tpu.memory_space<vmem>>, vector<1x128xf32>
    %cst_45 = arith.constant dense<0.000000e+00> : vector<16x128xf32>
    %78 = tpu.matmul %76, %77, %cst_45 {dimension_numbers = #tpu.dot_dimension_numbers<[1], [0], [0], [1], [0, 0, 1, 1], [], []>} : vector<16x1xf32>, vector<1x128xf32>, vector<16x128xf32> -> vector<16x128xf32>
    %cst_46 = arith.constant 9.99999974E-6 : f32
    %79 = vector.broadcast %cst_46 : f32 to vector<16x128xf32>
    %80 = arith.addf %78, %79 : vector<16x128xf32>
    %81 = math.rsqrt %80 : vector<16x128xf32>
    %82 = arith.mulf %69, %81 : vector<16x128xf32>
    %c0_47 = arith.constant 0 : index
    %c0_48 = arith.constant 0 : index
    %83 = vector.load %arg13[%c0_47, %c0_48] : memref<16x128xf32, #tpu.memory_space<vmem>>, vector<16x128xf32>
    tpu.vector_store %arg13[%c0_47, %c0_48], %58 {strides = array<i32>} : memref<16x128xf32, #tpu.memory_space<vmem>>, vector<16x128xf32>,
    %c0_49 = arith.constant 0 : index
    %c0_50 = arith.constant 0 : index
    %84 = vector.load %arg14[%c0_49, %c0_50] : memref<16x128xf32, #tpu.memory_space<vmem>>, vector<16x128xf32>
    tpu.vector_store %arg14[%c0_49, %c0_50], %82 {strides = array<i32>} : memref<16x128xf32, #tpu.memory_space<vmem>>, vector<16x128xf32>,
    %c0_51 = arith.constant 0 : index
    %c0_52 = arith.constant 0 : index
    %85 = vector.load %arg15[%c0_51, %c0_52] : memref<16x128xf32, #tpu.memory_space<vmem>>, vector<16x128xf32>
    %86 = arith.addf %85, %82 : vector<16x128xf32>
    %c0_53 = arith.constant 0 : index
    %c0_54 = arith.constant 0 : index
    %87 = vector.load %arg15[%c0_53, %c0_54] : memref<16x128xf32, #tpu.memory_space<vmem>>, vector<16x128xf32>
    tpu.vector_store %arg15[%c0_53, %c0_54], %86 {strides = array<i32>} : memref<16x128xf32, #tpu.memory_space<vmem>>, vector<16x128xf32>,
    %c2_i32 = arith.constant 2 : i32
    %88 = arith.cmpi eq, %arg1, %c2_i32 : i32
    %89 = arith.extui %88 : i1 to i32
    %c0_i32_55 = arith.constant 0 : i32
    %90 = arith.cmpi ne, %89, %c0_i32_55 : i32
    scf.if %90 {
      %c0_56 = arith.constant 0 : index
      %c0_57 = arith.constant 0 : index
      %91 = vector.load %arg15[%c0_56, %c0_57] : memref<16x128xf32, #tpu.memory_space<vmem>>, vector<16x128xf32>
      %c0_58 = arith.constant 0 : index
      %c0_59 = arith.constant 0 : index
      %92 = vector.load %arg10[%c0_58, %c0_59] : memref<128x1xf32, #tpu.memory_space<vmem>>, vector<128x1xf32>
      %cst_60 = arith.constant dense<0.000000e+00> : vector<16x1xf32>
      %93 = tpu.matmul %91, %92, %cst_60 {dimension_numbers = #tpu.dot_dimension_numbers<[1], [0], [0], [1], [0, 0, 1, 1], [], []>} : vector<16x128xf32>, vector<128x1xf32>, vector<16x1xf32> -> vector<16x1xf32>
      %c0_61 = arith.constant 0 : index
      %c0_62 = arith.constant 0 : index
      %94 = vector.load %arg8[%c0_61, %c0_62] : memref<8x16xf32, #tpu.memory_space<vmem>>, vector<8x16xf32>
      %cst_63 = arith.constant dense<0.000000e+00> : vector<8x1xf32>
      %95 = tpu.matmul %94, %93, %cst_63 {dimension_numbers = #tpu.dot_dimension_numbers<[1], [0], [0], [1], [0, 0, 1, 1], [], []>} : vector<8x16xf32>, vector<16x1xf32>, vector<8x1xf32> -> vector<8x1xf32>
      %c0_64 = arith.constant 0 : index
      %c0_65 = arith.constant 0 : index
      %96 = vector.load %arg9[%c0_64, %c0_65] : memref<16x8xf32, #tpu.memory_space<vmem>>, vector<16x8xf32>
      %cst_66 = arith.constant dense<0.000000e+00> : vector<16x1xf32>
      %97 = tpu.matmul %96, %95, %cst_66 {dimension_numbers = #tpu.dot_dimension_numbers<[1], [0], [0], [1], [0, 0, 1, 1], [], []>} : vector<16x8xf32>, vector<8x1xf32>, vector<16x1xf32> -> vector<16x1xf32>
      %c0_67 = arith.constant 0 : index
      %c0_68 = arith.constant 0 : index
      %98 = vector.load %arg11[%c0_67, %c0_68] : memref<1x128xf32, #tpu.memory_space<vmem>>, vector<1x128xf32>
      %cst_69 = arith.constant dense<0.000000e+00> : vector<16x128xf32>
      %99 = tpu.matmul %97, %98, %cst_69 {dimension_numbers = #tpu.dot_dimension_numbers<[1], [0], [0], [1], [0, 0, 1, 1], [], []>} : vector<16x1xf32>, vector<1x128xf32>, vector<16x128xf32> -> vector<16x128xf32>
      %100 = arith.subf %91, %99 : vector<16x128xf32>
      %101 = arith.mulf %100, %100 : vector<16x128xf32>
      %c0_70 = arith.constant 0 : index
      %c0_71 = arith.constant 0 : index
      %102 = vector.load %arg10[%c0_70, %c0_71] : memref<128x1xf32, #tpu.memory_space<vmem>>, vector<128x1xf32>
      %cst_72 = arith.constant dense<0.000000e+00> : vector<16x1xf32>
      %103 = tpu.matmul %101, %102, %cst_72 {dimension_numbers = #tpu.dot_dimension_numbers<[1], [0], [0], [1], [0, 0, 1, 1], [], []>} : vector<16x128xf32>, vector<128x1xf32>, vector<16x1xf32> -> vector<16x1xf32>
      %c0_73 = arith.constant 0 : index
      %c0_74 = arith.constant 0 : index
      %104 = vector.load %arg8[%c0_73, %c0_74] : memref<8x16xf32, #tpu.memory_space<vmem>>, vector<8x16xf32>
      %cst_75 = arith.constant dense<0.000000e+00> : vector<8x1xf32>
      %105 = tpu.matmul %104, %103, %cst_75 {dimension_numbers = #tpu.dot_dimension_numbers<[1], [0], [0], [1], [0, 0, 1, 1], [], []>} : vector<8x16xf32>, vector<16x1xf32>, vector<8x1xf32> -> vector<8x1xf32>
      %c0_76 = arith.constant 0 : index
      %c0_77 = arith.constant 0 : index
      %106 = vector.load %arg9[%c0_76, %c0_77] : memref<16x8xf32, #tpu.memory_space<vmem>>, vector<16x8xf32>
      %cst_78 = arith.constant dense<0.000000e+00> : vector<16x1xf32>
      %107 = tpu.matmul %106, %105, %cst_78 {dimension_numbers = #tpu.dot_dimension_numbers<[1], [0], [0], [1], [0, 0, 1, 1], [], []>} : vector<16x8xf32>, vector<8x1xf32>, vector<16x1xf32> -> vector<16x1xf32>
      %c0_79 = arith.constant 0 : index
      %c0_80 = arith.constant 0 : index
      %108 = vector.load %arg11[%c0_79, %c0_80] : memref<1x128xf32, #tpu.memory_space<vmem>>, vector<1x128xf32>
      %cst_81 = arith.constant dense<0.000000e+00> : vector<16x128xf32>
      %109 = tpu.matmul %107, %108, %cst_81 {dimension_numbers = #tpu.dot_dimension_numbers<[1], [0], [0], [1], [0, 0, 1, 1], [], []>} : vector<16x1xf32>, vector<1x128xf32>, vector<16x128xf32> -> vector<16x128xf32>
      %cst_82 = arith.constant 9.99999974E-6 : f32
      %110 = vector.broadcast %cst_82 : f32 to vector<16x128xf32>
      %111 = arith.addf %109, %110 : vector<16x128xf32>
      %112 = math.rsqrt %111 : vector<16x128xf32>
      %113 = arith.mulf %100, %112 : vector<16x128xf32>
      %c0_83 = arith.constant 0 : index
      %c0_84 = arith.constant 0 : index
      %114 = vector.load %arg12[%c0_83, %c0_84] : memref<16x128xf32, #tpu.memory_space<vmem>>, vector<16x128xf32>
      tpu.vector_store %arg12[%c0_83, %c0_84], %113 {strides = array<i32>} : memref<16x128xf32, #tpu.memory_space<vmem>>, vector<16x128xf32>,
    } else {
    }
    return
  }
  func.func @transform_0(%arg0: i32, %arg1: i32, %arg2: memref<3xi32, #tpu.memory_space<smem>>) -> (i32, i32) {
    %c0_i32 = arith.constant 0 : i32
    %c0_i32_0 = arith.constant 0 : i32
    return %c0_i32, %arg0 : i32, i32
  }
  func.func @transform_1(%arg0: i32, %arg1: i32, %arg2: memref<3xi32, #tpu.memory_space<smem>>) -> (i32, i32, i32) {
    %c0_i32 = arith.constant 0 : i32
    %c0_i32_0 = arith.constant 0 : i32
    %c0_i32_1 = arith.constant 0 : i32
    %c0_i32_2 = arith.constant 0 : i32
    return %c0_i32, %c0_i32_0, %c0_i32_1 : i32, i32, i32
  }
  func.func @transform_2(%arg0: i32, %arg1: i32, %arg2: memref<3xi32, #tpu.memory_space<smem>>) -> (i32, i32) {
    %c0_i32 = arith.constant 0 : i32
    %c0_i32_0 = arith.constant 0 : i32
    %c0_i32_1 = arith.constant 0 : i32
    return %c0_i32, %c0_i32_0 : i32, i32
  }
  func.func @transform_3(%arg0: i32, %arg1: i32, %arg2: memref<3xi32, #tpu.memory_space<smem>>) -> (i32, i32, i32) {
    %c0_i32 = arith.constant 0 : i32
    %c0_i32_0 = arith.constant 0 : i32
    %c0_i32_1 = arith.constant 0 : i32
    return %arg1, %c0_i32, %c0_i32_0 : i32, i32, i32
  }
  func.func @transform_4(%arg0: i32, %arg1: i32, %arg2: memref<3xi32, #tpu.memory_space<smem>>) -> (i32, i32, i32) {
    %c0_i32 = arith.constant 0 : i32
    %c0_i32_0 = arith.constant 0 : i32
    %c0_i32_1 = arith.constant 0 : i32
    return %arg1, %c0_i32, %c0_i32_0 : i32, i32, i32
  }
  func.func @transform_5(%arg0: i32, %arg1: i32, %arg2: memref<3xi32, #tpu.memory_space<smem>>) -> (i32, i32) {
    %c0_i32 = arith.constant 0 : i32
    %c0_i32_0 = arith.constant 0 : i32
    %c0_i32_1 = arith.constant 0 : i32
    return %c0_i32, %c0_i32_0 : i32, i32
  }
  func.func @transform_6(%arg0: i32, %arg1: i32, %arg2: memref<3xi32, #tpu.memory_space<smem>>) -> (i32, i32) {
    %c0_i32 = arith.constant 0 : i32
    %c0_i32_0 = arith.constant 0 : i32
    %c0_i32_1 = arith.constant 0 : i32
    return %c0_i32, %c0_i32_0 : i32, i32
  }
  func.func @transform_7(%arg0: i32, %arg1: i32, %arg2: memref<3xi32, #tpu.memory_space<smem>>) -> (i32, i32) {
    %c0_i32 = arith.constant 0 : i32
    %c0_i32_0 = arith.constant 0 : i32
    %c0_i32_1 = arith.constant 0 : i32
    return %c0_i32, %c0_i32_0 : i32, i32
  }
  func.func @transform_8(%arg0: i32, %arg1: i32, %arg2: memref<3xi32, #tpu.memory_space<smem>>) -> (i32, i32) {
    %c0_i32 = arith.constant 0 : i32
    %c0_i32_0 = arith.constant 0 : i32
    %c0_i32_1 = arith.constant 0 : i32
    return %c0_i32, %c0_i32_0 : i32, i32
  }
  func.func @transform_9(%arg0: i32, %arg1: i32, %arg2: memref<3xi32, #tpu.memory_space<smem>>) -> (i32, i32) {
    %c0_i32 = arith.constant 0 : i32
    %c0_i32_0 = arith.constant 0 : i32
    return %c0_i32, %arg0 : i32, i32
  }
}

</mosaic_0001>

<llo_original>
// kernel: tpu_custom_call.1
$region0: #{tpu_custom_call.1}
  #allocation0 [shape = 'u32[]', space=smem, size = 0x4, offset = 0x4, fixed_abs, tag = 'smem constant byte address 0x4 - core index']
  #allocation1 [shape = 'u32[144,128]{1,0:T(1,128)}', space=vmem, size = 0x12000, scoped, tag = 'internal scratch']
  #allocation2 [shape = 'f32[16,128]{1,0:T(8,128)}', space=vmem, size = 0x2000, scoped, tag = 'scratch operand']
  #allocation3 [shape = 'f32[16,128]{1,0:T(8,128)}', space=vmem, size = 0x2000, scoped, tag = 'scratch operand']
  #allocation4 [shape = 'f32[16,128]{1,0:T(8,128)}', space=vmem, size = 0x2000, scoped, tag = 'scratch operand']
  #allocation5 [shape = 's32[1]{0}', space=sflag, size = 0x4, scoped, tag = 'scoped memory for tpu_custom_call.1']
  #allocation6 [shape = 'u8[512]{0}', space=smem, size = 0x200, scoped, tag = 'prefetched SMEM operand 0']
  %s0 = inlined_call_operand.vmem [shape: s32[3], index: 0, kind: input, shape index: {}]
  %s1 = inlined_call_operand.vmem [shape: f32[4,256], index: 1, kind: input, shape index: {}]
  %s2 = inlined_call_operand.vmem [shape: f32[3,16,4], index: 2, kind: input, shape index: {}]
  %s3 = inlined_call_operand.vmem [shape: f32[16,1], index: 3, kind: input, shape index: {}]
  %s4 = inlined_call_operand.vmem [shape: f32[3,32,48], index: 4, kind: input, shape index: {}]
  %s5 = inlined_call_operand.vmem [shape: f32[3,16,16], index: 5, kind: input, shape index: {}]
  %s6 = inlined_call_operand.vmem [shape: f32[8,16], index: 6, kind: input, shape index: {}]
  %s7 = inlined_call_operand.vmem [shape: f32[16,8], index: 7, kind: input, shape index: {}]
  %s8 = inlined_call_operand.vmem [shape: f32[128,1], index: 8, kind: input, shape index: {}]
  %s9 = inlined_call_operand.vmem [shape: f32[1,128], index: 9, kind: input, shape index: {}]
  %s10 = inlined_call_operand.hbm [shape: f32[16,256], index: 10, kind: output, shape index: {}]
  %s11 = sld [smem:[#allocation0]]
  $region77: #{tpu_custom_call.1} parent=0
    _
  %s13 = ssub.s32 1, %s11
  %s14 = scalar_select 0, %s13, %s11
  %s15 = sshll.u32 %s0, 4
  %s16 = int_to_ptr.vmem [resolvable:$true] %s15
  %18 = dma.vmem_to_smem %s16, 16, [#allocation6], [#allocation5]
  %19 = dma.done [#allocation5], 16
  %20 = sfence
  $region1: #{tpu_custom_call.1} parent=0
    #allocation7 [shape = 'u8[16384]{0}', space=vmem, size = 0x4000, scoped, tag = 'output window, operand 0']
    #allocation8 [shape = 's32[2]{0}', space=sflag, size = 0x8, scoped, tag = 'scoped memory for tpu_custom_call.1']
    %21 = vsyncpa [#allocation8], 0
    %s22 = scalar_lea.sflag [#allocation8], 1
    %23 = vsyncpa %s22, 0
    loop: start=0, step=1, limit=8
    $region2: #{tpu_custom_call.1} parent=1 // loop_pre_header
      _
    $region3: #{tpu_custom_call.1} parent=1 // loop_header
      %s25 = sphi 0, %s29
      %p26 = scmp.ge.s32.totalorder %s25, 8
      %s32 = sphi 0, %s44
      %s33 = sphi 0, %s40
      %s34 = sphi 0, %s32
      %s35 = sphi 0, %s33
      %s36 = sphi 0, %s34
      %s37 = sphi 0, %s35
      %s47 = sphi 0, %s49
      %s50 = sphi 0, %s47
      %s51 = sphi 0, %s50
      %s67 = sphi 0, %s51
      %s71 = sphi 0, %s71
      %s73 = sphi 0, %s71
      %s74 = sphi 0, %s73
      %s88 = sphi 0, %s74
      %s92 = sphi 0, %s92
      %s94 = sphi 0, %s92
      %s95 = sphi 0, %s94
      %s109 = sphi 0, %s95
      %s115 = sphi 0, %s117
      %s118 = sphi 0, %s115
      %s119 = sphi 0, %s118
      %s135 = sphi 0, %s119
      %s141 = sphi 0, %s143
      %s144 = sphi 0, %s141
      %s145 = sphi 0, %s144
      %s161 = sphi 0, %s145
      %s165 = sphi 0, %s165
      %s167 = sphi 0, %s165
      %s168 = sphi 0, %s167
      %s182 = sphi 0, %s168
      %s186 = sphi 0, %s186
      %s188 = sphi 0, %s186
      %s189 = sphi 0, %s188
      %s203 = sphi 0, %s189
      %s207 = sphi 0, %s207
      %s209 = sphi 0, %s207
      %s210 = sphi 0, %s209
      %s224 = sphi 0, %s210
      %s228 = sphi 0, %s228
      %s230 = sphi 0, %s228
      %s231 = sphi 0, %s230
      %s245 = sphi 0, %s231
      %s251 = sphi 0, %s253
      %s254 = sphi 0, %s251
      %s255 = sphi 0, %s254
      %s271 = sphi 0, %s255
    $region4: #{tpu_custom_call.1} parent=1 // loop_header_branch
      %28 = sbr.rel (%p26) target = $region8
    $region5: #{tpu_custom_call.1} parent=1 // loop_body
      %s30 = ssub.s32 %s25, 1
      %s31 = ssub.s32 %s25, 2
      %s38 = sadd.s32 1, %s33
      %p39 = scmp.ge.s32.totalorder %s38, 3
      %s40 = scalar_select %p39, 0, %s38
      %s41 = sadd.s32 1, %s32
      %s42 = scalar_select %p39, %s41, %s32
      %p43 = scmp.ge.s32.totalorder %s42, 2
      %s44 = scalar_select %p43, 0, %s42
      %s45 = ssub.s32 %s32, %s44
      %p46 = scmp.eq.s32.totalorder %s45, 0
      %s48 = sadd.s32 %s47, 1
      %s49 = scalar_select %p46, %s47, %s48
      %p52 = pneg %p46
      %p53 = scmp.eq.s32.totalorder %s25, 5
      %p54 = por %p52, %p53
      %p55 = scmp.ne.s32.totalorder %s47, %s50
      %p56 = scmp.eq.s32.totalorder %s25, 0
      %p57 = por %p55, %p56
      %p58 = scmp.ne.s32.totalorder %s47, %s50
      %p59 = scmp.eq.s32.totalorder %s30, 5
      %p60 = por %p58, %p59
      %p61 = scmp.ne.s32.totalorder %s50, %s51
      %p62 = scmp.eq.s32.totalorder %s30, 0
      %p63 = por %p61, %p62
      %p64 = scmp.ne.s32.totalorder %s50, %s51
      %p65 = scmp.eq.s32.totalorder %s31, 5
      %p66 = por %p64, %p65
      %p68 = scmp.ne.s32.totalorder %s51, %s67
      %p69 = scmp.eq.s32.totalorder %s31, 0
      %p70 = por %p68, %p69
      %s72 = sadd.s32 %s71, 1
      %p75 = scmp.eq.s32.totalorder %s25, 5
      %p76 = scmp.ne.s32.totalorder %s71, %s73
      %p77 = scmp.eq.s32.totalorder %s25, 0
      %p78 = por %p76, %p77
      %p79 = scmp.ne.s32.totalorder %s71, %s73
      %p80 = scmp.eq.s32.totalorder %s30, 5
      %p81 = por %p79, %p80
      %p82 = scmp.ne.s32.totalorder %s73, %s74
      %p83 = scmp.eq.s32.totalorder %s30, 0
      %p84 = por %p82, %p83
      %p85 = scmp.ne.s32.totalorder %s73, %s74
      %p86 = scmp.eq.s32.totalorder %s31, 5
      %p87 = por %p85, %p86
      %p89 = scmp.ne.s32.totalorder %s74, %s88
      %p90 = scmp.eq.s32.totalorder %s31, 0
      %p91 = por %p89, %p90
      %s93 = sadd.s32 %s92, 1
      %p96 = scmp.eq.s32.totalorder %s25, 5
      %p97 = scmp.ne.s32.totalorder %s92, %s94
      %p98 = scmp.eq.s32.totalorder %s25, 0
      %p99 = por %p97, %p98
      %p100 = scmp.ne.s32.totalorder %s92, %s94
      %p101 = scmp.eq.s32.totalorder %s30, 5
      %p102 = por %p100, %p101
      %p103 = scmp.ne.s32.totalorder %s94, %s95
      %p104 = scmp.eq.s32.totalorder %s30, 0
      %p105 = por %p103, %p104
      %p106 = scmp.ne.s32.totalorder %s94, %s95
      %p107 = scmp.eq.s32.totalorder %s31, 5
      %p108 = por %p106, %p107
      %p110 = scmp.ne.s32.totalorder %s95, %s109
      %p111 = scmp.eq.s32.totalorder %s31, 0
      %p112 = por %p110, %p111
      %s113 = ssub.s32 %s33, %s40
      %p114 = scmp.eq.s32.totalorder %s113, 0
      %s116 = sadd.s32 %s115, 1
      %s117 = scalar_select %p114, %s115, %s116
      %p120 = pneg %p114
      %p121 = scmp.eq.s32.totalorder %s25, 5
      %p122 = por %p120, %p121
      %p123 = scmp.ne.s32.totalorder %s115, %s118
      %p124 = scmp.eq.s32.totalorder %s25, 0
      %p125 = por %p123, %p124
      %p126 = scmp.ne.s32.totalorder %s115, %s118
      %p127 = scmp.eq.s32.totalorder %s30, 5
      %p128 = por %p126, %p127
      %p129 = scmp.ne.s32.totalorder %s118, %s119
      %p130 = scmp.eq.s32.totalorder %s30, 0
      %p131 = por %p129, %p130
      %p132 = scmp.ne.s32.totalorder %s118, %s119
      %p133 = scmp.eq.s32.totalorder %s31, 5
      %p134 = por %p132, %p133
      %p136 = scmp.ne.s32.totalorder %s119, %s135
      %p137 = scmp.eq.s32.totalorder %s31, 0
      %p138 = por %p136, %p137
      %s139 = ssub.s32 %s33, %s40
      %p140 = scmp.eq.s32.totalorder %s139, 0
      %s142 = sadd.s32 %s141, 1
      %s143 = scalar_select %p140, %s141, %s142
      %p146 = pneg %p140
      %p147 = scmp.eq.s32.totalorder %s25, 5
      %p148 = por %p146, %p147
      %p149 = scmp.ne.s32.totalorder %s141, %s144
      %p150 = scmp.eq.s32.totalorder %s25, 0
      %p151 = por %p149, %p150
      %p152 = scmp.ne.s32.totalorder %s141, %s144
      %p153 = scmp.eq.s32.totalorder %s30, 5
      %p154 = por %p152, %p153
      %p155 = scmp.ne.s32.totalorder %s144, %s145
      %p156 = scmp.eq.s32.totalorder %s30, 0
      %p157 = por %p155, %p156
      %p158 = scmp.ne.s32.totalorder %s144, %s145
      %p159 = scmp.eq.s32.totalorder %s31, 5
      %p160 = por %p158, %p159
      %p162 = scmp.ne.s32.totalorder %s145, %s161
      %p163 = scmp.eq.s32.totalorder %s31, 0
      %p164 = por %p162, %p163
      %s166 = sadd.s32 %s165, 1
      %p169 = scmp.eq.s32.totalorder %s25, 5
      %p170 = scmp.ne.s32.totalorder %s165, %s167
      %p171 = scmp.eq.s32.totalorder %s25, 0
      %p172 = por %p170, %p171
      %p173 = scmp.ne.s32.totalorder %s165, %s167
      %p174 = scmp.eq.s32.totalorder %s30, 5
      %p175 = por %p173, %p174
      %p176 = scmp.ne.s32.totalorder %s167, %s168
      %p177 = scmp.eq.s32.totalorder %s30, 0
      %p178 = por %p176, %p177
      %p179 = scmp.ne.s32.totalorder %s167, %s168
      %p180 = scmp.eq.s32.totalorder %s31, 5
      %p181 = por %p179, %p180
      %p183 = scmp.ne.s32.totalorder %s168, %s182
      %p184 = scmp.eq.s32.totalorder %s31, 0
      %p185 = por %p183, %p184
      %s187 = sadd.s32 %s186, 1
      %p190 = scmp.eq.s32.totalorder %s25, 5
      %p191 = scmp.ne.s32.totalorder %s186, %s188
      %p192 = scmp.eq.s32.totalorder %s25, 0
      %p193 = por %p191, %p192
      %p194 = scmp.ne.s32.totalorder %s186, %s188
      %p195 = scmp.eq.s32.totalorder %s30, 5
      %p196 = por %p194, %p195
      %p197 = scmp.ne.s32.totalorder %s188, %s189
      %p198 = scmp.eq.s32.totalorder %s30, 0
      %p199 = por %p197, %p198
      %p200 = scmp.ne.s32.totalorder %s188, %s189
      %p201 = scmp.eq.s32.totalorder %s31, 5
      %p202 = por %p200, %p201
      %p204 = scmp.ne.s32.totalorder %s189, %s203
      %p205 = scmp.eq.s32.totalorder %s31, 0
      %p206 = por %p204, %p205
      %s208 = sadd.s32 %s207, 1
      %p211 = scmp.eq.s32.totalorder %s25, 5
      %p212 = scmp.ne.s32.totalorder %s207, %s209
      %p213 = scmp.eq.s32.totalorder %s25, 0
      %p214 = por %p212, %p213
      %p215 = scmp.ne.s32.totalorder %s207, %s209
      %p216 = scmp.eq.s32.totalorder %s30, 5
      %p217 = por %p215, %p216
      %p218 = scmp.ne.s32.totalorder %s209, %s210
      %p219 = scmp.eq.s32.totalorder %s30, 0
      %p220 = por %p218, %p219
      %p221 = scmp.ne.s32.totalorder %s209, %s210
      %p222 = scmp.eq.s32.totalorder %s31, 5
      %p223 = por %p221, %p222
      %p225 = scmp.ne.s32.totalorder %s210, %s224
      %p226 = scmp.eq.s32.totalorder %s31, 0
      %p227 = por %p225, %p226
      %s229 = sadd.s32 %s228, 1
      %p232 = scmp.eq.s32.totalorder %s25, 5
      %p233 = scmp.ne.s32.totalorder %s228, %s230
      %p234 = scmp.eq.s32.totalorder %s25, 0
      %p235 = por %p233, %p234
      %p236 = scmp.ne.s32.totalorder %s228, %s230
      %p237 = scmp.eq.s32.totalorder %s30, 5
      %p238 = por %p236, %p237
      %p239 = scmp.ne.s32.totalorder %s230, %s231
      %p240 = scmp.eq.s32.totalorder %s30, 0
      %p241 = por %p239, %p240
      %p242 = scmp.ne.s32.totalorder %s230, %s231
      %p243 = scmp.eq.s32.totalorder %s31, 5
      %p244 = por %p242, %p243
      %p246 = scmp.ne.s32.totalorder %s231, %s245
      %p247 = scmp.eq.s32.totalorder %s31, 0
      %p248 = por %p246, %p247
      %s249 = ssub.s32 %s32, %s44
      %p250 = scmp.eq.s32.totalorder %s249, 0
      %s252 = sadd.s32 %s251, 1
      %s253 = scalar_select %p250, %s251, %s252
      %p256 = pneg %p250
      %p257 = scmp.eq.s32.totalorder %s25, 5
      %p258 = por %p256, %p257
      %p259 = scmp.ne.s32.totalorder %s251, %s254
      %p260 = scmp.eq.s32.totalorder %s25, 0
      %p261 = por %p259, %p260
      %p262 = scmp.ne.s32.totalorder %s251, %s254
      %p263 = scmp.eq.s32.totalorder %s30, 5
      %p264 = por %p262, %p263
      %p265 = scmp.ne.s32.totalorder %s254, %s255
      %p266 = scmp.eq.s32.totalorder %s30, 0
      %p267 = por %p265, %p266
      %p268 = scmp.ne.s32.totalorder %s254, %s255
      %p269 = scmp.eq.s32.totalorder %s31, 5
      %p270 = por %p268, %p269
      %p272 = scmp.ne.s32.totalorder %s255, %s271
      %p273 = scmp.eq.s32.totalorder %s31, 0
      %p274 = por %p272, %p273
      %p275 = scmp.le.s32.totalorder 1, %s25
      %p276 = scmp.lt.s32.totalorder %s25, 7
      %p277 = pnand %p275, %p276
      %p278 = pneg %p277
      // Predicated region
      $region9: #{tpu_custom_call.1} parent=5 // pred_check
        _
      $region10: #{tpu_custom_call.1} parent=5 // pred_check_branch
        %280 = sbr.rel (%p277) target = $region12
      $region11: #{tpu_custom_call.1} parent=5 // pred_region
        %s281 = ssub.s32 %s25, 1
        // Predicated region
        $region13: #{tpu_custom_call.1} parent=11 // pred_check
          %p282 = pneg %p84
        $region14: #{tpu_custom_call.1} parent=11 // pred_check_branch
          %284 = sbr.rel (%p282) target = $region16
        $region15: #{tpu_custom_call.1} parent=11 // pred_region
          _
        $region16: #{tpu_custom_call.1} parent=11 // pred_fallthru
          _
        // Predicated region
        $region17: #{tpu_custom_call.1} parent=11 // pred_check
          %p285 = pneg %p105
        $region18: #{tpu_custom_call.1} parent=11 // pred_check_branch
          %287 = sbr.rel (%p285) target = $region20
        $region19: #{tpu_custom_call.1} parent=11 // pred_region
          _
        $region20: #{tpu_custom_call.1} parent=11 // pred_fallthru
          _
        // Predicated region
        $region21: #{tpu_custom_call.1} parent=11 // pred_check
          %p288 = pneg %p178
        $region22: #{tpu_custom_call.1} parent=11 // pred_check_branch
          %290 = sbr.rel (%p288) target = $region24
        $region23: #{tpu_custom_call.1} parent=11 // pred_region
          _
        $region24: #{tpu_custom_call.1} parent=11 // pred_fallthru
          _
        // Predicated region
        $region25: #{tpu_custom_call.1} parent=11 // pred_check
          %p291 = pneg %p199
        $region26: #{tpu_custom_call.1} parent=11 // pred_check_branch
          %293 = sbr.rel (%p291) target = $region28
        $region27: #{tpu_custom_call.1} parent=11 // pred_region
          _
        $region28: #{tpu_custom_call.1} parent=11 // pred_fallthru
          _
        // Predicated region
        $region29: #{tpu_custom_call.1} parent=11 // pred_check
          %p294 = pneg %p220
        $region30: #{tpu_custom_call.1} parent=11 // pred_check_branch
          %296 = sbr.rel (%p294) target = $region32
        $region31: #{tpu_custom_call.1} parent=11 // pred_region
          _
        $region32: #{tpu_custom_call.1} parent=11 // pred_fallthru
          _
        // Predicated region
        $region33: #{tpu_custom_call.1} parent=11 // pred_check
          %p297 = pneg %p241
        $region34: #{tpu_custom_call.1} parent=11 // pred_check_branch
          %299 = sbr.rel (%p297) target = $region36
        $region35: #{tpu_custom_call.1} parent=11 // pred_region
          _
        $region36: #{tpu_custom_call.1} parent=11 // pred_fallthru
          _
      $region12: #{tpu_custom_call.1} parent=5 // pred_fallthru
        _
      %p300 = scmp.lt.s32.totalorder %s25, 6
      // Predicated region
      $region37: #{tpu_custom_call.1} parent=5 // pred_check
        %p301 = pneg %p300
      $region38: #{tpu_custom_call.1} parent=5 // pred_check_branch
        %303 = sbr.rel (%p301) target = $region40
      $region39: #{tpu_custom_call.1} parent=5 // pred_region
        // Predicated region
        $region41: #{tpu_custom_call.1} parent=39 // pred_check
          %p304 = pneg %p57
        $region42: #{tpu_custom_call.1} parent=39 // pred_check_branch
          %306 = sbr.rel (%p304) target = $region44
        $region43: #{tpu_custom_call.1} parent=39 // pred_region
          %p307 = scmp.lt.s32.totalorder %s32, 1
          %s308 = scalar_select %p307, %s32, 1
          %s309 = smul.addr %s308, 4
          %s310 = scalar_lea.vmem %s1, %s309
        $region44: #{tpu_custom_call.1} parent=39 // pred_fallthru
          _
        // Predicated region
        $region45: #{tpu_custom_call.1} parent=39 // pred_check
          %p311 = pneg %p125
        $region46: #{tpu_custom_call.1} parent=39 // pred_check_branch
          %313 = sbr.rel (%p311) target = $region48
        $region47: #{tpu_custom_call.1} parent=39 // pred_region
          %p314 = scmp.lt.s32.totalorder %s33, 2
          %s315 = scalar_select %p314, %s33, 2
          %s316 = smul.addr %s315, 4
          %s317 = smul.addr %s316, 8
          %s318 = scalar_lea.vmem %s4, %s317
        $region48: #{tpu_custom_call.1} parent=39 // pred_fallthru
          _
        // Predicated region
        $region49: #{tpu_custom_call.1} parent=39 // pred_check
          %p319 = pneg %p151
        $region50: #{tpu_custom_call.1} parent=39 // pred_check_branch
          %321 = sbr.rel (%p319) target = $region52
        $region51: #{tpu_custom_call.1} parent=39 // pred_region
          %p322 = scmp.lt.s32.totalorder %s33, 2
          %s323 = scalar_select %p322, %s33, 2
          %s324 = smul.addr %s323, 2
          %s325 = smul.addr %s324, 8
          %s326 = scalar_lea.vmem %s5, %s325
        $region52: #{tpu_custom_call.1} parent=39 // pred_fallthru
          _
      $region40: #{tpu_custom_call.1} parent=5 // pred_fallthru
        _
      %p327 = scmp.le.s32.totalorder 1, %s25
      %p328 = scmp.lt.s32.totalorder %s25, 7
      %p329 = pnand %p327, %p328
      %p330 = pneg %p329
      // Predicated region
      $region53: #{tpu_custom_call.1} parent=5 // pred_check
        _
      $region54: #{tpu_custom_call.1} parent=5 // pred_check_branch
        %332 = sbr.rel (%p329) target = $region56
      $region55: #{tpu_custom_call.1} parent=5 // pred_region
        %s333 = ssub.s32 %s25, 1
        %p334 = scmp.lt.s32.totalorder %s34, 1
        %s335 = scalar_select %p334, %s34, 1
        %s336 = smul.addr %s335, 4
        %s337 = scalar_lea.vmem %s1, %s336
        %p338 = pneg %p63
        %p339 = pneg %p60
        %p340 = pneg %p84
        %p341 = pneg %p81
        %p342 = pneg %p105
        %p343 = pneg %p102
        %p344 = scmp.lt.s32.totalorder %s35, 2
        %s345 = scalar_select %p344, %s35, 2
        %s346 = smul.addr %s345, 4
        %s347 = smul.addr %s346, 8
        %s348 = scalar_lea.vmem %s4, %s347
        %p349 = pneg %p131
        %p350 = pneg %p128
        %p351 = scmp.lt.s32.totalorder %s35, 2
        %s352 = scalar_select %p351, %s35, 2
        %s353 = smul.addr %s352, 2
        %s354 = smul.addr %s353, 8
        %s355 = scalar_lea.vmem %s5, %s354
        %p356 = pneg %p157
        %p357 = pneg %p154
        %p358 = pneg %p178
        %p359 = pneg %p175
        %p360 = pneg %p199
        %p361 = pneg %p196
        %p362 = pneg %p220
        %p363 = pneg %p217
        %p364 = pneg %p241
        %p365 = pneg %p238
        %p366 = pneg %p267
        %p367 = pneg %p264
        %s368 = sand.u32 %s254, 1
        %s369 = scalar_lea.sflag [#allocation8], %s368
        %s370 = sand.u32 %s254, 1
        %s371 = smul.addr %s370, 16
        %s372 = scalar_lea.vmem [#allocation7], %s371
        %p373 = scmp.lt.s32.totalorder %s34, 1
        %s374 = scalar_select %p373, %s34, 1
        %s375 = smul.addr %s374, 4
        %s376 = scalar_lea.vmem %s1, %s375
        %p377 = scmp.lt.s32.totalorder %s35, 2
        %s378 = scalar_select %p377, %s35, 2
        %s379 = smul.addr %s378, 4
        %s380 = smul.addr %s379, 8
        %s381 = scalar_lea.vmem %s4, %s380
        %p382 = scmp.lt.s32.totalorder %s35, 2
        %s383 = scalar_select %p382, %s35, 2
        %s384 = smul.addr %s383, 2
        %s385 = smul.addr %s384, 8
        %s386 = scalar_lea.vmem %s5, %s385
        %v387 = vlaneseq
        %v388 = vand.u32 %v387, 127
        %vm389 = vcmp.lt.s32.totalorder %v388, 0
        %v390 = vsub.s32 0, %v388
        %v391 = vsel %vm389, %v390, %v388
        %v392 = vshrl.u32 %v391, 7
        %v393 = vand.u32 %v391, 127
        %v394 = vsub.s32 0, %v393
        %v395 = vsel %vm389, %v394, %v393
        %vm396 = vcmp.ne.s32.totalorder %v395, 0
        %vm397 = vcmp.lt.s32.totalorder %v395, 0
        %vm398 = vmand %vm397, %vm396
        %v399 = vadd.s32 %v395, 128
        %v400 = vsel %vm398, %v399, %v395
        %p401 = scmp.eq.s32.totalorder %s35, 0
        // Predicated region
        $region57: #{tpu_custom_call.1} parent=55 // pred_check
          %p402 = pneg %p401
        $region58: #{tpu_custom_call.1} parent=55 // pred_check_branch
          %404 = sbr.rel (%p402) target = $region60
        $region59: #{tpu_custom_call.1} parent=55 // pred_region
          %v405 = vld [vmem:[%s376] sm:$0xf]
          %vm406 = vcmp.ge.s32.totalorder %v400, 1
          %v407 = vsel %vm406, 1, 0
          %v408 = vcvt.s32.f32 %v407
          %vm409 = vcmp.lt.s32.totalorder %v400, 127
          %v410 = vsel %vm409, 1, 0
          %v411 = vcvt.s32.f32 %v410
          %v412 = vld [vmem:[%s2] sm:$0xff]
          %v413 = vld [vmem:[%s2 + $0x8] sm:$0xff]
          %v414 = vld [vmem:[%s2 + $0x10] sm:$0xff]
          %v415 = vld [vmem:[%s2 + $0x18] sm:$0xff]
          %v416 = vld [vmem:[%s2 + $0x20] sm:$0xff]
          %v417 = vld [vmem:[%s2 + $0x28] sm:$0xff]
          %418 = vrot.lane.b32.xlu0 %v405, 1
          %v419 = vpop.permute.xlu0 %418
          %v420 = vmul.f32 %v419, %v408
          %vm421 = vcmask 31744
          %v423 = vsel %vm421, %v412, 0
          %v426 = vsel %vm421, %v413, 0
          %vm428 = vcmask 1043456
          %v430 = vsel %vm428, %v420, 0
          %432 = vmatprep.subr.mxu0 0.0
          %433 = vmatpush1.msra.mxu0 %v430
          %434 = vmatprep.subr.mxu0 0.0
          %435 = vmatpush1.msra.mxu0 0.0
          %436 = vmatprep.subr.mxu0 0.0
          %437 = vmatpush1.msra.mxu0 0.0
          %438 = vmatprep.subr.mxu0 0.0
          %439 = vmatpush1.msra.mxu0 0.0
          %440 = vmatprep.subr.mxu0 0.0
          %441 = vmatpush1.msra.mxu0 0.0
          %442 = vmatprep.subr.mxu0 0.0
          %443 = vmatpush1.msra.mxu0 0.0
          %444 = vmatprep.subr.mxu0 0.0
          %445 = vmatpush1.msra.mxu0 0.0
          %446 = vmatprep.subr.mxu0 0.0
          %447 = vmatpush1.msra.mxu0 0.0
          %448 = vmatprep.subr.mxu0 0.0
          %449 = vmatpush1.msra.mxu0 0.0
          %450 = vmatprep.subr.mxu0 0.0
          %451 = vmatpush1.msra.mxu0 0.0
          %452 = vmatprep.subr.mxu0 0.0
          %453 = vmatpush1.msra.mxu0 0.0
          %454 = vmatprep.subr.mxu0 0.0
          %455 = vmatpush1.msra.mxu0 0.0
          %456 = vmatprep.subr.mxu0 0.0
          %457 = vmatpush1.msra.mxu0 0.0
          %458 = vmatprep.subr.mxu0 0.0
          %459 = vmatpush1.msra.mxu0 0.0
          %460 = vmatprep.subr.mxu0 0.0
          %461 = vmatpush1.msra.mxu0 0.0
          %462 = vmatprep.subr.mxu0 0.0
          %463 = vmatpush1.msra.mxu0 0.0
          %464 = vmatprep.subr.mxu0 0.0
          %465 = vmatpush1.msra.mxu0 0.0
          %466 = vmatprep.subr.mxu0 0.0
          %467 = vmatpush1.msra.mxu0 0.0
          %468 = vmatprep.subr.mxu0 0.0
          %469 = vmatpush1.msra.mxu0 0.0
          %470 = vmatprep.subr.mxu0 0.0
          %471 = vmatpush1.msra.mxu0 0.0
          %472 = vmatprep.subr.mxu0 0.0
          %473 = vmatpush1.msra.mxu0 0.0
          %474 = vmatprep.subr.mxu0 0.0
          %475 = vmatpush1.msra.mxu0 0.0
          %476 = vmatprep.subr.mxu0 0.0
          %477 = vmatpush1.msra.mxu0 0.0
          %478 = vmatprep.subr.mxu0 0.0
          %479 = vmatpush1.msra.mxu0 0.0
          %480 = vmatprep.subr.mxu0 0.0
          %481 = vmatpush1.msra.mxu0 0.0
          %482 = vmatprep.subr.mxu0 0.0
          %483 = vmatpush1.msra.mxu0 0.0
          %484 = vmatprep.subr.mxu0 0.0
          %485 = vmatpush1.msra.mxu0 0.0
          %486 = vmatprep.subr.mxu0 0.0
          %487 = vmatpush1.msra.mxu0 0.0
          %488 = vmatprep.subr.mxu0 0.0
          %489 = vmatpush1.msra.mxu0 0.0
          %490 = vmatprep.subr.mxu0 0.0
          %491 = vmatpush1.msra.mxu0 0.0
          %492 = vmatprep.subr.mxu0 0.0
          %493 = vmatpush1.msra.mxu0 0.0
          %494 = vmatprep.subr.mxu0 0.0
          %495 = vmatpush1.msra.mxu0 0.0
          %496 = vmatprep.mubr.f32.mxu0 0.0
          %497 = vmatmul.mubr.f32.gmra.mrb[0].mxu0 %v423
          %v498 = vpop.f32.mrb[0].mxu0
          %v499 = vadd.f32 0.0, %v498
          %v500 = vpop.f32.mrb[0].mxu0
          %501 = vmatprep.mubr.f32.mxu0 0.0
          %502 = vmatmul.mubr.f32.gmra.mrb[0].mxu0 %v426
          %v503 = vpop.f32.mrb[0].mxu0
          %v504 = vadd.f32 0.0, %v503
          %v505 = vpop.f32.mrb[0].mxu0
          %506 = vdwg.mxu0
          %v508 = vsel %vm421, %v414, 0
          %v511 = vsel %vm421, %v415, 0
          %v514 = vsel %vm428, %v405, 0
          %516 = vmatprep.subr.mxu0 0.0
          %517 = vmatpush1.msra.mxu0 %v514
          %518 = vmatprep.subr.mxu0 0.0
          %519 = vmatpush1.msra.mxu0 0.0
          %520 = vmatprep.subr.mxu0 0.0
          %521 = vmatpush1.msra.mxu0 0.0
          %522 = vmatprep.subr.mxu0 0.0
          %523 = vmatpush1.msra.mxu0 0.0
          %524 = vmatprep.subr.mxu0 0.0
          %525 = vmatpush1.msra.mxu0 0.0
          %526 = vmatprep.subr.mxu0 0.0
          %527 = vmatpush1.msra.mxu0 0.0
          %528 = vmatprep.subr.mxu0 0.0
          %529 = vmatpush1.msra.mxu0 0.0
          %530 = vmatprep.subr.mxu0 0.0
          %531 = vmatpush1.msra.mxu0 0.0
          %532 = vmatprep.subr.mxu0 0.0
          %533 = vmatpush1.msra.mxu0 0.0
          %534 = vmatprep.subr.mxu0 0.0
          %535 = vmatpush1.msra.mxu0 0.0
          %536 = vmatprep.subr.mxu0 0.0
          %537 = vmatpush1.msra.mxu0 0.0
          %538 = vmatprep.subr.mxu0 0.0
          %539 = vmatpush1.msra.mxu0 0.0
          %540 = vmatprep.subr.mxu0 0.0
          %541 = vmatpush1.msra.mxu0 0.0
          %542 = vmatprep.subr.mxu0 0.0
          %543 = vmatpush1.msra.mxu0 0.0
          %544 = vmatprep.subr.mxu0 0.0
          %545 = vmatpush1.msra.mxu0 0.0
          %546 = vmatprep.subr.mxu0 0.0
          %547 = vmatpush1.msra.mxu0 0.0
          %548 = vmatprep.subr.mxu0 0.0
          %549 = vmatpush1.msra.mxu0 0.0
          %550 = vmatprep.subr.mxu0 0.0
          %551 = vmatpush1.msra.mxu0 0.0
          %552 = vmatprep.subr.mxu0 0.0
          %553 = vmatpush1.msra.mxu0 0.0
          %554 = vmatprep.subr.mxu0 0.0
          %555 = vmatpush1.msra.mxu0 0.0
          %556 = vmatprep.subr.mxu0 0.0
          %557 = vmatpush1.msra.mxu0 0.0
          %558 = vmatprep.subr.mxu0 0.0
          %559 = vmatpush1.msra.mxu0 0.0
          %560 = vmatprep.subr.mxu0 0.0
          %561 = vmatpush1.msra.mxu0 0.0
          %562 = vmatprep.subr.mxu0 0.0
          %563 = vmatpush1.msra.mxu0 0.0
          %564 = vmatprep.subr.mxu0 0.0
          %565 = vmatpush1.msra.mxu0 0.0
          %566 = vmatprep.subr.mxu0 0.0
          %567 = vmatpush1.msra.mxu0 0.0
          %568 = vmatprep.subr.mxu0 0.0
          %569 = vmatpush1.msra.mxu0 0.0
          %570 = vmatprep.subr.mxu0 0.0
          %571 = vmatpush1.msra.mxu0 0.0
          %572 = vmatprep.subr.mxu0 0.0
          %573 = vmatpush1.msra.mxu0 0.0
          %574 = vmatprep.subr.mxu0 0.0
          %575 = vmatpush1.msra.mxu0 0.0
          %576 = vmatprep.subr.mxu0 0.0
          %577 = vmatpush1.msra.mxu0 0.0
          %578 = vmatprep.subr.mxu0 0.0
          %579 = vmatpush1.msra.mxu0 0.0
          %580 = vmatprep.mubr.f32.mxu0 0.0
          %581 = vmatmul.mubr.f32.gmra.mrb[0].mxu0 %v508
          %v582 = vpop.f32.mrb[0].mxu0
          %v583 = vadd.f32 %v499, %v582
          %v584 = vpop.f32.mrb[0].mxu0
          %585 = vmatprep.mubr.f32.mxu0 0.0
          %586 = vmatmul.mubr.f32.gmra.mrb[0].mxu0 %v511
          %v587 = vpop.f32.mrb[0].mxu0
          %v588 = vadd.f32 %v504, %v587
          %v589 = vpop.f32.mrb[0].mxu0
          %590 = vdwg.mxu0
          %591 = vrot.lane.b32.xlu0 %v405, 127
          %v592 = vpop.permute.xlu0 %591
          %v593 = vmul.f32 %v592, %v411
          %v595 = vsel %vm421, %v416, 0
          %v598 = vsel %vm421, %v417, 0
          %v601 = vsel %vm428, %v593, 0
          %603 = vmatprep.subr.mxu0 0.0
          %604 = vmatpush1.msra.mxu0 %v601
          %605 = vmatprep.subr.mxu0 0.0
          %606 = vmatpush1.msra.mxu0 0.0
          %607 = vmatprep.subr.mxu0 0.0
          %608 = vmatpush1.msra.mxu0 0.0
          %609 = vmatprep.subr.mxu0 0.0
          %610 = vmatpush1.msra.mxu0 0.0
          %611 = vmatprep.subr.mxu0 0.0
          %612 = vmatpush1.msra.mxu0 0.0
          %613 = vmatprep.subr.mxu0 0.0
          %614 = vmatpush1.msra.mxu0 0.0
          %615 = vmatprep.subr.mxu0 0.0
          %616 = vmatpush1.msra.mxu0 0.0
          %617 = vmatprep.subr.mxu0 0.0
          %618 = vmatpush1.msra.mxu0 0.0
          %619 = vmatprep.subr.mxu0 0.0
          %620 = vmatpush1.msra.mxu0 0.0
          %621 = vmatprep.subr.mxu0 0.0
          %622 = vmatpush1.msra.mxu0 0.0
          %623 = vmatprep.subr.mxu0 0.0
          %624 = vmatpush1.msra.mxu0 0.0
          %625 = vmatprep.subr.mxu0 0.0
          %626 = vmatpush1.msra.mxu0 0.0
          %627 = vmatprep.subr.mxu0 0.0
          %628 = vmatpush1.msra.mxu0 0.0
          %629 = vmatprep.subr.mxu0 0.0
          %630 = vmatpush1.msra.mxu0 0.0
          %631 = vmatprep.subr.mxu0 0.0
          %632 = vmatpush1.msra.mxu0 0.0
          %633 = vmatprep.subr.mxu0 0.0
          %634 = vmatpush1.msra.mxu0 0.0
          %635 = vmatprep.subr.mxu0 0.0
          %636 = vmatpush1.msra.mxu0 0.0
          %637 = vmatprep.subr.mxu0 0.0
          %638 = vmatpush1.msra.mxu0 0.0
          %639 = vmatprep.subr.mxu0 0.0
          %640 = vmatpush1.msra.mxu0 0.0
          %641 = vmatprep.subr.mxu0 0.0
          %642 = vmatpush1.msra.mxu0 0.0
          %643 = vmatprep.subr.mxu0 0.0
          %644 = vmatpush1.msra.mxu0 0.0
          %645 = vmatprep.subr.mxu0 0.0
          %646 = vmatpush1.msra.mxu0 0.0
          %647 = vmatprep.subr.mxu0 0.0
          %648 = vmatpush1.msra.mxu0 0.0
          %649 = vmatprep.subr.mxu0 0.0
          %650 = vmatpush1.msra.mxu0 0.0
          %651 = vmatprep.subr.mxu0 0.0
          %652 = vmatpush1.msra.mxu0 0.0
          %653 = vmatprep.subr.mxu0 0.0
          %654 = vmatpush1.msra.mxu0 0.0
          %655 = vmatprep.subr.mxu0 0.0
          %656 = vmatpush1.msra.mxu0 0.0
          %657 = vmatprep.subr.mxu0 0.0
          %658 = vmatpush1.msra.mxu0 0.0
          %659 = vmatprep.subr.mxu0 0.0
          %660 = vmatpush1.msra.mxu0 0.0
          %661 = vmatprep.subr.mxu0 0.0
          %662 = vmatpush1.msra.mxu0 0.0
          %663 = vmatprep.subr.mxu0 0.0
          %664 = vmatpush1.msra.mxu0 0.0
          %665 = vmatprep.subr.mxu0 0.0
          %666 = vmatpush1.msra.mxu0 0.0
          %667 = vmatprep.mubr.f32.mxu0 0.0
          %668 = vmatmul.mubr.f32.gmra.mrb[0].mxu0 %v595
          %v669 = vpop.f32.mrb[0].mxu0
          %v670 = vadd.f32 0.0, %v669
          %v671 = vpop.f32.mrb[0].mxu0
          %672 = vmatprep.mubr.f32.mxu0 0.0
          %673 = vmatmul.mubr.f32.gmra.mrb[0].mxu0 %v598
          %v674 = vpop.f32.mrb[0].mxu0
          %v675 = vadd.f32 0.0, %v674
          %v676 = vpop.f32.mrb[0].mxu0
          %677 = vdwg.mxu0
          %v678 = vadd.f32 %v583, %v670
          %v679 = vadd.f32 %v588, %v675
          %v680 = vld [vmem:[%s3] sm:$0xff]
          %v681 = vld [vmem:[%s3 + $0x8] sm:$0xff]
          %683 = vset.pattern.permute.xlu0 0
          %684 = vperm.xlu0 %683, %v680
          %v685 = vpop.permute.xlu0 %684
          %688 = vset.pattern.permute.xlu0 0
          %689 = vperm.xlu0 %688, %v681
          %v690 = vpop.permute.xlu0 %689
          %v692 = vadd.f32 %v678, %v685
          %v693 = vadd.f32 %v679, %v690
          %694 = vst [vmem:[#allocation2] sm:$0xff] %v692
          %695 = vst [vmem:[#allocation2 + $0x8] sm:$0xff] %v693
          %696 = vst [vmem:[#allocation3] sm:$0xff] %v692
          %697 = vst [vmem:[#allocation3 + $0x8] sm:$0xff] %v693
          %698 = vst [vmem:[#allocation4] sm:$0xff] 0.0
          %699 = vst [vmem:[#allocation4 + $0x8] sm:$0xff] 0.0
        $region60: #{tpu_custom_call.1} parent=55 // pred_fallthru
          _
        %s700 = sld [smem:[#allocation6 + %s35]]
        %p701 = scmp.lt.s32.totalorder %s700, 128
        %s702 = scalar_select %p701, %s700, 0
        %s703 = ssub.s32 128, %s700
        %s704 = scalar_select %p701, %s703, 0
        %v705 = vstv %s700
        %vm706 = vcmp.ge.s32.totalorder %v400, %v705
        %v707 = vsel %vm706, 1, 0
        %v708 = vcvt.s32.f32 %v707
        %v709 = vstv %s703
        %vm710 = vcmp.lt.s32.totalorder %v400, %v709
        %v711 = vsel %vm710, 1, 0
        %v712 = vcvt.s32.f32 %v711
        %v713 = vld [vmem:[#allocation2] sm:$0xff]
        %v714 = vld [vmem:[#allocation2 + $0x8] sm:$0xff]
        %s715 = sand.u32 %s702, 127
        %s716 = sand.u32 %s715, 127
        %717 = vrot.lane.b32.xlu0 %v713, %s716
        %v718 = vpop.permute.xlu0 %717
        %719 = vrot.lane.b32.xlu0 %v714, %s716
        %v720 = vpop.permute.xlu0 %719
        %v721 = vmul.f32 %v718, %v708
        %v722 = vmul.f32 %v720, %v708
        %s723 = sand.u32 %s704, 127
        %s724 = sand.u32 %s723, 127
        %725 = vrot.lane.b32.xlu0 %v713, %s724
        %v726 = vpop.permute.xlu0 %725
        %727 = vrot.lane.b32.xlu0 %v714, %s724
        %v728 = vpop.permute.xlu0 %727
        %v729 = vmul.f32 %v726, %v712
        %v730 = vmul.f32 %v728, %v712
        %v731 = vld [vmem:[%s381] sm:$0xff]
        %v732 = vld [vmem:[%s381 + $0x8] sm:$0xff]
        %v733 = vld [vmem:[%s381 + $0x10] sm:$0xff]
        %v734 = vld [vmem:[%s381 + $0x18] sm:$0xff]
        %vm735 = vcmask 392192
        %v737 = vsel %vm735, %v731, 0
        %v740 = vsel %vm735, %v732, 0
        %v743 = vsel %vm735, %v733, 0
        %v746 = vsel %vm735, %v734, 0
        %748 = vmatprep.subr.mxu0 0.0
        %749 = vmatpush1.msra.mxu0 %v721
        %750 = vmatprep.subr.mxu0 0.0
        %751 = vmatpush1.msra.mxu0 %v722
        %752 = vmatprep.subr.mxu0 0.0
        %753 = vmatpush1.msra.mxu0 %v713
        %754 = vmatprep.subr.mxu0 0.0
        %755 = vmatpush1.msra.mxu0 %v714
        %756 = vmatprep.subr.mxu0 0.0
        %757 = vmatpush1.msra.mxu0 %v729
        %758 = vmatprep.subr.mxu0 0.0
        %759 = vmatpush1.msra.mxu0 %v730
        %760 = vmatprep.subr.mxu0 0.0
        %761 = vmatpush1.msra.mxu0 0.0
        %762 = vmatprep.subr.mxu0 0.0
        %763 = vmatpush1.msra.mxu0 0.0
        %764 = vmatprep.subr.mxu0 0.0
        %765 = vmatpush1.msra.mxu0 0.0
        %766 = vmatprep.subr.mxu0 0.0
        %767 = vmatpush1.msra.mxu0 0.0
        %768 = vmatprep.subr.mxu0 0.0
        %769 = vmatpush1.msra.mxu0 0.0
        %770 = vmatprep.subr.mxu0 0.0
        %771 = vmatpush1.msra.mxu0 0.0
        %772 = vmatprep.subr.mxu0 0.0
        %773 = vmatpush1.msra.mxu0 0.0
        %774 = vmatprep.subr.mxu0 0.0
        %775 = vmatpush1.msra.mxu0 0.0
        %776 = vmatprep.subr.mxu0 0.0
        %777 = vmatpush1.msra.mxu0 0.0
        %778 = vmatprep.subr.mxu0 0.0
        %779 = vmatpush1.msra.mxu0 0.0
        %780 = vmatprep.subr.mxu0 0.0
        %781 = vmatpush1.msra.mxu0 0.0
        %782 = vmatprep.subr.mxu0 0.0
        %783 = vmatpush1.msra.mxu0 0.0
        %784 = vmatprep.subr.mxu0 0.0
        %785 = vmatpush1.msra.mxu0 0.0
        %786 = vmatprep.subr.mxu0 0.0
        %787 = vmatpush1.msra.mxu0 0.0
        %788 = vmatprep.subr.mxu0 0.0
        %789 = vmatpush1.msra.mxu0 0.0
        %790 = vmatprep.subr.mxu0 0.0
        %791 = vmatpush1.msra.mxu0 0.0
        %792 = vmatprep.subr.mxu0 0.0
        %793 = vmatpush1.msra.mxu0 0.0
        %794 = vmatprep.subr.mxu0 0.0
        %795 = vmatpush1.msra.mxu0 0.0
        %796 = vmatprep.subr.mxu0 0.0
        %797 = vmatpush1.msra.mxu0 0.0
        %798 = vmatprep.subr.mxu0 0.0
        %799 = vmatpush1.msra.mxu0 0.0
        %800 = vmatprep.subr.mxu0 0.0
        %801 = vmatpush1.msra.mxu0 0.0
        %802 = vmatprep.subr.mxu0 0.0
        %803 = vmatpush1.msra.mxu0 0.0
        %804 = vmatprep.subr.mxu0 0.0
        %805 = vmatpush1.msra.mxu0 0.0
        %806 = vmatprep.subr.mxu0 0.0
        %807 = vmatpush1.msra.mxu0 0.0
        %808 = vmatprep.subr.mxu0 0.0
        %809 = vmatpush1.msra.mxu0 0.0
        %810 = vmatprep.subr.mxu0 0.0
        %811 = vmatpush1.msra.mxu0 0.0
        %812 = vmatprep.mubr.f32.mxu0 0.0
        %813 = vmatmul.mubr.f32.gmra.mrb[0].mxu0 %v737
        %v814 = vpop.f32.mrb[0].mxu0
        %v815 = vadd.f32 0.0, %v814
        %v816 = vpop.f32.mrb[0].mxu0
        %817 = vmatprep.mubr.f32.mxu0 0.0
        %818 = vmatmul.mubr.f32.gmra.mrb[0].mxu0 %v740
        %v819 = vpop.f32.mrb[0].mxu0
        %v820 = vadd.f32 0.0, %v819
        %v821 = vpop.f32.mrb[0].mxu0
        %822 = vmatprep.mubr.f32.mxu0 0.0
        %823 = vmatmul.mubr.f32.gmra.mrb[0].mxu0 %v743
        %v824 = vpop.f32.mrb[0].mxu0
        %v825 = vadd.f32 0.0, %v824
        %v826 = vpop.f32.mrb[0].mxu0
        %827 = vmatprep.mubr.f32.mxu0 0.0
        %828 = vmatmul.mubr.f32.gmra.mrb[0].mxu0 %v746
        %v829 = vpop.f32.mrb[0].mxu0
        %v830 = vadd.f32 0.0, %v829
        %v831 = vpop.f32.mrb[0].mxu0
        %832 = vdwg.mxu0
        %v833 = vtanh.pop %v815
        %v834 = vtanh.pop %v820
        %v835 = vxor.u32 %v825, 2147483648
        %v836 = vxor.u32 %v830, 2147483648
        %v837 = vmul.f32 %v835, 1.442695
        %v838 = vpow.pop %v837
        %v839 = vmul.f32 %v836, 1.442695
        %v840 = vpow.pop %v839
        %v841 = vadd.f32 %v838, 1.0
        %v842 = vadd.f32 %v840, 1.0
        %v843 = vrcp.pop %v841
        %v844 = vmul.f32 1.0, %v843
        %v845 = vrcp.pop %v842
        %v846 = vmul.f32 1.0, %v845
        %v847 = vmul.f32 %v833, %v844
        %v848 = vmul.f32 %v834, %v846
        %v849 = vld [vmem:[%s386] sm:$0xff]
        %v850 = vld [vmem:[%s386 + $0x8] sm:$0xff]
        %vm851 = vcmask 130048
        %v853 = vsel %vm851, %v849, 0
        %v856 = vsel %vm851, %v850, 0
        %858 = vmatprep.subr.mxu0 0.0
        %859 = vmatpush1.msra.mxu0 %v847
        %860 = vmatprep.subr.mxu0 0.0
        %861 = vmatpush1.msra.mxu0 %v848
        %862 = vmatprep.subr.mxu0 0.0
        %863 = vmatpush1.msra.mxu0 0.0
        %864 = vmatprep.subr.mxu0 0.0
        %865 = vmatpush1.msra.mxu0 0.0
        %866 = vmatprep.subr.mxu0 0.0
        %867 = vmatpush1.msra.mxu0 0.0
        %868 = vmatprep.subr.mxu0 0.0
        %869 = vmatpush1.msra.mxu0 0.0
        %870 = vmatprep.subr.mxu0 0.0
        %871 = vmatpush1.msra.mxu0 0.0
        %872 = vmatprep.subr.mxu0 0.0
        %873 = vmatpush1.msra.mxu0 0.0
        %874 = vmatprep.subr.mxu0 0.0
        %875 = vmatpush1.msra.mxu0 0.0
        %876 = vmatprep.subr.mxu0 0.0
        %877 = vmatpush1.msra.mxu0 0.0
        %878 = vmatprep.subr.mxu0 0.0
        %879 = vmatpush1.msra.mxu0 0.0
        %880 = vmatprep.subr.mxu0 0.0
        %881 = vmatpush1.msra.mxu0 0.0
        %882 = vmatprep.subr.mxu0 0.0
        %883 = vmatpush1.msra.mxu0 0.0
        %884 = vmatprep.subr.mxu0 0.0
        %885 = vmatpush1.msra.mxu0 0.0
        %886 = vmatprep.subr.mxu0 0.0
        %887 = vmatpush1.msra.mxu0 0.0
        %888 = vmatprep.subr.mxu0 0.0
        %889 = vmatpush1.msra.mxu0 0.0
        %890 = vmatprep.subr.mxu0 0.0
        %891 = vmatpush1.msra.mxu0 0.0
        %892 = vmatprep.subr.mxu0 0.0
        %893 = vmatpush1.msra.mxu0 0.0
        %894 = vmatprep.subr.mxu0 0.0
        %895 = vmatpush1.msra.mxu0 0.0
        %896 = vmatprep.subr.mxu0 0.0
        %897 = vmatpush1.msra.mxu0 0.0
        %898 = vmatprep.subr.mxu0 0.0
        %899 = vmatpush1.msra.mxu0 0.0
        %900 = vmatprep.subr.mxu0 0.0
        %901 = vmatpush1.msra.mxu0 0.0
        %902 = vmatprep.subr.mxu0 0.0
        %903 = vmatpush1.msra.mxu0 0.0
        %904 = vmatprep.subr.mxu0 0.0
        %905 = vmatpush1.msra.mxu0 0.0
        %906 = vmatprep.subr.mxu0 0.0
        %907 = vmatpush1.msra.mxu0 0.0
        %908 = vmatprep.subr.mxu0 0.0
        %909 = vmatpush1.msra.mxu0 0.0
        %910 = vmatprep.subr.mxu0 0.0
        %911 = vmatpush1.msra.mxu0 0.0
        %912 = vmatprep.subr.mxu0 0.0
        %913 = vmatpush1.msra.mxu0 0.0
        %914 = vmatprep.subr.mxu0 0.0
        %915 = vmatpush1.msra.mxu0 0.0
        %916 = vmatprep.subr.mxu0 0.0
        %917 = vmatpush1.msra.mxu0 0.0
        %918 = vmatprep.subr.mxu0 0.0
        %919 = vmatpush1.msra.mxu0 0.0
        %920 = vmatprep.subr.mxu0 0.0
        %921 = vmatpush1.msra.mxu0 0.0
        %922 = vmatprep.mubr.f32.mxu0 0.0
        %923 = vmatmul.mubr.f32.gmra.mrb[0].mxu0 %v853
        %v924 = vpop.f32.mrb[0].mxu0
        %v925 = vadd.f32 0.0, %v924
        %v926 = vpop.f32.mrb[0].mxu0
        %927 = vmatprep.mubr.f32.mxu0 0.0
        %928 = vmatmul.mubr.f32.gmra.mrb[0].mxu0 %v856
        %v929 = vpop.f32.mrb[0].mxu0
        %v930 = vadd.f32 0.0, %v929
        %v931 = vpop.f32.mrb[0].mxu0
        %932 = vdwg.mxu0
        %v933 = vld [vmem:[#allocation3] sm:$0xff]
        %v934 = vld [vmem:[#allocation3 + $0x8] sm:$0xff]
        %v935 = vadd.f32 %v933, %v925
        %v936 = vadd.f32 %v934, %v930
        %v937 = vld [vmem:[%s8] sm:$0xff]
        %v938 = vld [vmem:[%s8 + $0x8] sm:$0xff]
        %v939 = vld [vmem:[%s8 + $0x10] sm:$0xff]
        %v940 = vld [vmem:[%s8 + $0x18] sm:$0xff]
        %v941 = vld [vmem:[%s8 + $0x20] sm:$0xff]
        %v942 = vld [vmem:[%s8 + $0x28] sm:$0xff]
        %v943 = vld [vmem:[%s8 + $0x30] sm:$0xff]
        %v944 = vld [vmem:[%s8 + $0x38] sm:$0xff]
        %v945 = vld [vmem:[%s8 + $0x40] sm:$0xff]
        %v946 = vld [vmem:[%s8 + $0x48] sm:$0xff]
        %v947 = vld [vmem:[%s8 + $0x50] sm:$0xff]
        %v948 = vld [vmem:[%s8 + $0x58] sm:$0xff]
        %v949 = vld [vmem:[%s8 + $0x60] sm:$0xff]
        %v950 = vld [vmem:[%s8 + $0x68] sm:$0xff]
        %v951 = vld [vmem:[%s8 + $0x70] sm:$0xff]
        %v952 = vld [vmem:[%s8 + $0x78] sm:$0xff]
        %953 = vmatprep.subr.mxu0 0.0
        %954 = vmatpush1.msra.mxu0 %v937
        %955 = vmatprep.subr.mxu0 0.0
        %956 = vmatpush1.msra.mxu0 %v938
        %957 = vmatprep.subr.mxu0 0.0
        %958 = vmatpush1.msra.mxu0 %v939
        %959 = vmatprep.subr.mxu0 0.0
        %960 = vmatpush1.msra.mxu0 %v940
        %961 = vmatprep.subr.mxu0 0.0
        %962 = vmatpush1.msra.mxu0 %v941
        %963 = vmatprep.subr.mxu0 0.0
        %964 = vmatpush1.msra.mxu0 %v942
        %965 = vmatprep.subr.mxu0 0.0
        %966 = vmatpush1.msra.mxu0 %v943
        %967 = vmatprep.subr.mxu0 0.0
        %968 = vmatpush1.msra.mxu0 %v944
        %969 = vmatprep.subr.mxu0 0.0
        %970 = vmatpush1.msra.mxu0 %v945
        %971 = vmatprep.subr.mxu0 0.0
        %972 = vmatpush1.msra.mxu0 %v946
        %973 = vmatprep.subr.mxu0 0.0
        %974 = vmatpush1.msra.mxu0 %v947
        %975 = vmatprep.subr.mxu0 0.0
        %976 = vmatpush1.msra.mxu0 %v948
        %977 = vmatprep.subr.mxu0 0.0
        %978 = vmatpush1.msra.mxu0 %v949
        %979 = vmatprep.subr.mxu0 0.0
        %980 = vmatpush1.msra.mxu0 %v950
        %981 = vmatprep.subr.mxu0 0.0
        %982 = vmatpush1.msra.mxu0 %v951
        %983 = vmatprep.subr.mxu0 0.0
        %984 = vmatpush1.msra.mxu0 %v952
        %985 = vmatprep.subr.mxu0 0.0
        %986 = vmatpush1.msra.mxu0 0.0
        %987 = vmatprep.subr.mxu0 0.0
        %988 = vmatpush1.msra.mxu0 0.0
        %989 = vmatprep.subr.mxu0 0.0
        %990 = vmatpush1.msra.mxu0 0.0
        %991 = vmatprep.subr.mxu0 0.0
        %992 = vmatpush1.msra.mxu0 0.0
        %993 = vmatprep.subr.mxu0 0.0
        %994 = vmatpush1.msra.mxu0 0.0
        %995 = vmatprep.subr.mxu0 0.0
        %996 = vmatpush1.msra.mxu0 0.0
        %997 = vmatprep.subr.mxu0 0.0
        %998 = vmatpush1.msra.mxu0 0.0
        %999 = vmatprep.subr.mxu0 0.0
        %1000 = vmatpush1.msra.mxu0 0.0
        %1001 = vmatprep.subr.mxu0 0.0
        %1002 = vmatpush1.msra.mxu0 0.0
        %1003 = vmatprep.subr.mxu0 0.0
        %1004 = vmatpush1.msra.mxu0 0.0
        %1005 = vmatprep.subr.mxu0 0.0
        %1006 = vmatpush1.msra.mxu0 0.0
        %1007 = vmatprep.subr.mxu0 0.0
        %1008 = vmatpush1.msra.mxu0 0.0
        %1009 = vmatprep.subr.mxu0 0.0
        %1010 = vmatpush1.msra.mxu0 0.0
        %1011 = vmatprep.subr.mxu0 0.0
        %1012 = vmatpush1.msra.mxu0 0.0
        %1013 = vmatprep.subr.mxu0 0.0
        %1014 = vmatpush1.msra.mxu0 0.0
        %1015 = vmatprep.subr.mxu0 0.0
        %1016 = vmatpush1.msra.mxu0 0.0
        %1017 = vmatprep.mubr.f32.mxu0 0.0
        %1018 = vmatmul.mubr.f32.gmra.mrb[0].mxu0 %v935
        %v1019 = vpop.f32.mrb[0].mxu0
        %v1020 = vadd.f32 0.0, %v1019
        %v1021 = vpop.f32.mrb[0].mxu0
        %1022 = vmatprep.mubr.f32.mxu0 0.0
        %1023 = vmatmul.mubr.f32.gmra.mrb[0].mxu0 %v936
        %v1024 = vpop.f32.mrb[0].mxu0
        %v1025 = vadd.f32 0.0, %v1024
        %v1026 = vpop.f32.mrb[0].mxu0
        %1027 = vdwg.mxu0
        %v1028 = vld [vmem:[%s6] sm:$0xff]
        %v1030 = vsel %vm851, %v1028, 0
        %1032 = vmatprep.subr.mxu0 0.0
        %1033 = vmatpush1.msra.mxu0 %v1020
        %1034 = vmatprep.subr.mxu0 0.0
        %1035 = vmatpush1.msra.mxu0 %v1025
        %1036 = vmatprep.subr.mxu0 0.0
        %1037 = vmatpush1.msra.mxu0 0.0
        %1038 = vmatprep.subr.mxu0 0.0
        %1039 = vmatpush1.msra.mxu0 0.0
        %1040 = vmatprep.subr.mxu0 0.0
        %1041 = vmatpush1.msra.mxu0 0.0
        %1042 = vmatprep.subr.mxu0 0.0
        %1043 = vmatpush1.msra.mxu0 0.0
        %1044 = vmatprep.subr.mxu0 0.0
        %1045 = vmatpush1.msra.mxu0 0.0
        %1046 = vmatprep.subr.mxu0 0.0
        %1047 = vmatpush1.msra.mxu0 0.0
        %1048 = vmatprep.subr.mxu0 0.0
        %1049 = vmatpush1.msra.mxu0 0.0
        %1050 = vmatprep.subr.mxu0 0.0
        %1051 = vmatpush1.msra.mxu0 0.0
        %1052 = vmatprep.subr.mxu0 0.0
        %1053 = vmatpush1.msra.mxu0 0.0
        %1054 = vmatprep.subr.mxu0 0.0
        %1055 = vmatpush1.msra.mxu0 0.0
        %1056 = vmatprep.subr.mxu0 0.0
        %1057 = vmatpush1.msra.mxu0 0.0
        %1058 = vmatprep.subr.mxu0 0.0
        %1059 = vmatpush1.msra.mxu0 0.0
        %1060 = vmatprep.subr.mxu0 0.0
        %1061 = vmatpush1.msra.mxu0 0.0
        %1062 = vmatprep.subr.mxu0 0.0
        %1063 = vmatpush1.msra.mxu0 0.0
        %1064 = vmatprep.subr.mxu0 0.0
        %1065 = vmatpush1.msra.mxu0 0.0
        %1066 = vmatprep.subr.mxu0 0.0
        %1067 = vmatpush1.msra.mxu0 0.0
        %1068 = vmatprep.subr.mxu0 0.0
        %1069 = vmatpush1.msra.mxu0 0.0
        %1070 = vmatprep.subr.mxu0 0.0
        %1071 = vmatpush1.msra.mxu0 0.0
        %1072 = vmatprep.subr.mxu0 0.0
        %1073 = vmatpush1.msra.mxu0 0.0
        %1074 = vmatprep.subr.mxu0 0.0
        %1075 = vmatpush1.msra.mxu0 0.0
        %1076 = vmatprep.subr.mxu0 0.0
        %1077 = vmatpush1.msra.mxu0 0.0
        %1078 = vmatprep.subr.mxu0 0.0
        %1079 = vmatpush1.msra.mxu0 0.0
        %1080 = vmatprep.subr.mxu0 0.0
        %1081 = vmatpush1.msra.mxu0 0.0
        %1082 = vmatprep.subr.mxu0 0.0
        %1083 = vmatpush1.msra.mxu0 0.0
        %1084 = vmatprep.subr.mxu0 0.0
        %1085 = vmatpush1.msra.mxu0 0.0
        %1086 = vmatprep.subr.mxu0 0.0
        %1087 = vmatpush1.msra.mxu0 0.0
        %1088 = vmatprep.subr.mxu0 0.0
        %1089 = vmatpush1.msra.mxu0 0.0
        %1090 = vmatprep.subr.mxu0 0.0
        %1091 = vmatpush1.msra.mxu0 0.0
        %1092 = vmatprep.subr.mxu0 0.0
        %1093 = vmatpush1.msra.mxu0 0.0
        %1094 = vmatprep.subr.mxu0 0.0
        %1095 = vmatpush1.msra.mxu0 0.0
        %1096 = vmatprep.mubr.f32.mxu0 0.0
        %1097 = vmatmul.mubr.f32.gmra.mrb[0].mxu0 %v1030
        %v1098 = vpop.f32.mrb[0].mxu0
        %v1099 = vadd.f32 0.0, %v1098
        %v1100 = vpop.f32.mrb[0].mxu0
        %1101 = vdwg.mxu0
        %v1102 = vld [vmem:[%s7] sm:$0xff]
        %v1103 = vld [vmem:[%s7 + $0x8] sm:$0xff]
        %vm1104 = vcmask 64512
        %v1106 = vsel %vm1104, %v1102, 0
        %v1109 = vsel %vm1104, %v1103, 0
        %1111 = vmatprep.subr.mxu0 0.0
        %1112 = vmatpush1.msra.mxu0 %v1099
        %1113 = vmatprep.subr.mxu0 0.0
        %1114 = vmatpush1.msra.mxu0 0.0
        %1115 = vmatprep.subr.mxu0 0.0
        %1116 = vmatpush1.msra.mxu0 0.0
        %1117 = vmatprep.subr.mxu0 0.0
        %1118 = vmatpush1.msra.mxu0 0.0
        %1119 = vmatprep.subr.mxu0 0.0
        %1120 = vmatpush1.msra.mxu0 0.0
        %1121 = vmatprep.subr.mxu0 0.0
        %1122 = vmatpush1.msra.mxu0 0.0
        %1123 = vmatprep.subr.mxu0 0.0
        %1124 = vmatpush1.msra.mxu0 0.0
        %1125 = vmatprep.subr.mxu0 0.0
        %1126 = vmatpush1.msra.mxu0 0.0
        %1127 = vmatprep.subr.mxu0 0.0
        %1128 = vmatpush1.msra.mxu0 0.0
        %1129 = vmatprep.subr.mxu0 0.0
        %1130 = vmatpush1.msra.mxu0 0.0
        %1131 = vmatprep.subr.mxu0 0.0
        %1132 = vmatpush1.msra.mxu0 0.0
        %1133 = vmatprep.subr.mxu0 0.0
        %1134 = vmatpush1.msra.mxu0 0.0
        %1135 = vmatprep.subr.mxu0 0.0
        %1136 = vmatpush1.msra.mxu0 0.0
        %1137 = vmatprep.subr.mxu0 0.0
        %1138 = vmatpush1.msra.mxu0 0.0
        %1139 = vmatprep.subr.mxu0 0.0
        %1140 = vmatpush1.msra.mxu0 0.0
        %1141 = vmatprep.subr.mxu0 0.0
        %1142 = vmatpush1.msra.mxu0 0.0
        %1143 = vmatprep.subr.mxu0 0.0
        %1144 = vmatpush1.msra.mxu0 0.0
        %1145 = vmatprep.subr.mxu0 0.0
        %1146 = vmatpush1.msra.mxu0 0.0
        %1147 = vmatprep.subr.mxu0 0.0
        %1148 = vmatpush1.msra.mxu0 0.0
        %1149 = vmatprep.subr.mxu0 0.0
        %1150 = vmatpush1.msra.mxu0 0.0
        %1151 = vmatprep.subr.mxu0 0.0
        %1152 = vmatpush1.msra.mxu0 0.0
        %1153 = vmatprep.subr.mxu0 0.0
        %1154 = vmatpush1.msra.mxu0 0.0
        %1155 = vmatprep.subr.mxu0 0.0
        %1156 = vmatpush1.msra.mxu0 0.0
        %1157 = vmatprep.subr.mxu0 0.0
        %1158 = vmatpush1.msra.mxu0 0.0
        %1159 = vmatprep.subr.mxu0 0.0
        %1160 = vmatpush1.msra.mxu0 0.0
        %1161 = vmatprep.subr.mxu0 0.0
        %1162 = vmatpush1.msra.mxu0 0.0
        %1163 = vmatprep.subr.mxu0 0.0
        %1164 = vmatpush1.msra.mxu0 0.0
        %1165 = vmatprep.subr.mxu0 0.0
        %1166 = vmatpush1.msra.mxu0 0.0
        %1167 = vmatprep.subr.mxu0 0.0
        %1168 = vmatpush1.msra.mxu0 0.0
        %1169 = vmatprep.subr.mxu0 0.0
        %1170 = vmatpush1.msra.mxu0 0.0
        %1171 = vmatprep.subr.mxu0 0.0
        %1172 = vmatpush1.msra.mxu0 0.0
        %1173 = vmatprep.subr.mxu0 0.0
        %1174 = vmatpush1.msra.mxu0 0.0
        %1175 = vmatprep.mubr.f32.mxu0 0.0
        %1176 = vmatmul.mubr.f32.gmra.mrb[0].mxu0 %v1106
        %v1177 = vpop.f32.mrb[0].mxu0
        %v1178 = vadd.f32 0.0, %v1177
        %v1179 = vpop.f32.mrb[0].mxu0
        %1180 = vmatprep.mubr.f32.mxu0 0.0
        %1181 = vmatmul.mubr.f32.gmra.mrb[0].mxu0 %v1109
        %v1182 = vpop.f32.mrb[0].mxu0
        %v1183 = vadd.f32 0.0, %v1182
        %v1184 = vpop.f32.mrb[0].mxu0
        %1185 = vdwg.mxu0
        %v1186 = vld [vmem:[%s9] sm:$0x1]
        %vm1187 = vcmask 7168
        %v1189 = vsel %vm1187, %v1178, 0
        %v1192 = vsel %vm1187, %v1183, 0
        %vm1194 = vcmask 1040384
        %v1196 = vsel %vm1194, %v1186, 0
        %1198 = vmatprep.subr.mxu0 0.0
        %1199 = vmatpush1.msra.mxu0 %v1196
        %1200 = vmatprep.subr.mxu0 0.0
        %1201 = vmatpush1.msra.mxu0 0.0
        %1202 = vmatprep.subr.mxu0 0.0
        %1203 = vmatpush1.msra.mxu0 0.0
        %1204 = vmatprep.subr.mxu0 0.0
        %1205 = vmatpush1.msra.mxu0 0.0
        %1206 = vmatprep.subr.mxu0 0.0
        %1207 = vmatpush1.msra.mxu0 0.0
        %1208 = vmatprep.subr.mxu0 0.0
        %1209 = vmatpush1.msra.mxu0 0.0
        %1210 = vmatprep.subr.mxu0 0.0
        %1211 = vmatpush1.msra.mxu0 0.0
        %1212 = vmatprep.subr.mxu0 0.0
        %1213 = vmatpush1.msra.mxu0 0.0
        %1214 = vmatprep.subr.mxu0 0.0
        %1215 = vmatpush1.msra.mxu0 0.0
        %1216 = vmatprep.subr.mxu0 0.0
        %1217 = vmatpush1.msra.mxu0 0.0
        %1218 = vmatprep.subr.mxu0 0.0
        %1219 = vmatpush1.msra.mxu0 0.0
        %1220 = vmatprep.subr.mxu0 0.0
        %1221 = vmatpush1.msra.mxu0 0.0
        %1222 = vmatprep.subr.mxu0 0.0
        %1223 = vmatpush1.msra.mxu0 0.0
        %1224 = vmatprep.subr.mxu0 0.0
        %1225 = vmatpush1.msra.mxu0 0.0
        %1226 = vmatprep.subr.mxu0 0.0
        %1227 = vmatpush1.msra.mxu0 0.0
        %1228 = vmatprep.subr.mxu0 0.0
        %1229 = vmatpush1.msra.mxu0 0.0
        %1230 = vmatprep.subr.mxu0 0.0
        %1231 = vmatpush1.msra.mxu0 0.0
        %1232 = vmatprep.subr.mxu0 0.0
        %1233 = vmatpush1.msra.mxu0 0.0
        %1234 = vmatprep.subr.mxu0 0.0
        %1235 = vmatpush1.msra.mxu0 0.0
        %1236 = vmatprep.subr.mxu0 0.0
        %1237 = vmatpush1.msra.mxu0 0.0
        %1238 = vmatprep.subr.mxu0 0.0
        %1239 = vmatpush1.msra.mxu0 0.0
        %1240 = vmatprep.subr.mxu0 0.0
        %1241 = vmatpush1.msra.mxu0 0.0
        %1242 = vmatprep.subr.mxu0 0.0
        %1243 = vmatpush1.msra.mxu0 0.0
        %1244 = vmatprep.subr.mxu0 0.0
        %1245 = vmatpush1.msra.mxu0 0.0
        %1246 = vmatprep.subr.mxu0 0.0
        %1247 = vmatpush1.msra.mxu0 0.0
        %1248 = vmatprep.subr.mxu0 0.0
        %1249 = vmatpush1.msra.mxu0 0.0
        %1250 = vmatprep.subr.mxu0 0.0
        %1251 = vmatpush1.msra.mxu0 0.0
        %1252 = vmatprep.subr.mxu0 0.0
        %1253 = vmatpush1.msra.mxu0 0.0
        %1254 = vmatprep.subr.mxu0 0.0
        %1255 = vmatpush1.msra.mxu0 0.0
        %1256 = vmatprep.subr.mxu0 0.0
        %1257 = vmatpush1.msra.mxu0 0.0
        %1258 = vmatprep.subr.mxu0 0.0
        %1259 = vmatpush1.msra.mxu0 0.0
        %1260 = vmatprep.subr.mxu0 0.0
        %1261 = vmatpush1.msra.mxu0 0.0
        %1262 = vmatprep.mubr.f32.mxu0 0.0
        %1263 = vmatmul.mubr.f32.gmra.mrb[0].mxu0 %v1189
        %v1264 = vpop.f32.mrb[0].mxu0
        %v1265 = vadd.f32 0.0, %v1264
        %v1266 = vpop.f32.mrb[0].mxu0
        %1267 = vmatprep.mubr.f32.mxu0 0.0
        %1268 = vmatmul.mubr.f32.gmra.mrb[0].mxu0 %v1192
        %v1269 = vpop.f32.mrb[0].mxu0
        %v1270 = vadd.f32 0.0, %v1269
        %v1271 = vpop.f32.mrb[0].mxu0
        %1272 = vdwg.mxu0
        %v1273 = vsub.f32 %v935, %v1265
        %v1274 = vsub.f32 %v936, %v1270
        %v1275 = vmul.f32 %v1273, %v1273
        %v1276 = vmul.f32 %v1274, %v1274
        %1277 = vmatprep.subr.mxu0 0.0
        %1278 = vmatpush1.msra.mxu0 %v937
        %1279 = vmatprep.subr.mxu0 0.0
        %1280 = vmatpush1.msra.mxu0 %v938
        %1281 = vmatprep.subr.mxu0 0.0
        %1282 = vmatpush1.msra.mxu0 %v939
        %1283 = vmatprep.subr.mxu0 0.0
        %1284 = vmatpush1.msra.mxu0 %v940
        %1285 = vmatprep.subr.mxu0 0.0
        %1286 = vmatpush1.msra.mxu0 %v941
        %1287 = vmatprep.subr.mxu0 0.0
        %1288 = vmatpush1.msra.mxu0 %v942
        %1289 = vmatprep.subr.mxu0 0.0
        %1290 = vmatpush1.msra.mxu0 %v943
        %1291 = vmatprep.subr.mxu0 0.0
        %1292 = vmatpush1.msra.mxu0 %v944
        %1293 = vmatprep.subr.mxu0 0.0
        %1294 = vmatpush1.msra.mxu0 %v945
        %1295 = vmatprep.subr.mxu0 0.0
        %1296 = vmatpush1.msra.mxu0 %v946
        %1297 = vmatprep.subr.mxu0 0.0
        %1298 = vmatpush1.msra.mxu0 %v947
        %1299 = vmatprep.subr.mxu0 0.0
        %1300 = vmatpush1.msra.mxu0 %v948
        %1301 = vmatprep.subr.mxu0 0.0
        %1302 = vmatpush1.msra.mxu0 %v949
        %1303 = vmatprep.subr.mxu0 0.0
        %1304 = vmatpush1.msra.mxu0 %v950
        %1305 = vmatprep.subr.mxu0 0.0
        %1306 = vmatpush1.msra.mxu0 %v951
        %1307 = vmatprep.subr.mxu0 0.0
        %1308 = vmatpush1.msra.mxu0 %v952
        %1309 = vmatprep.subr.mxu0 0.0
        %1310 = vmatpush1.msra.mxu0 0.0
        %1311 = vmatprep.subr.mxu0 0.0
        %1312 = vmatpush1.msra.mxu0 0.0
        %1313 = vmatprep.subr.mxu0 0.0
        %1314 = vmatpush1.msra.mxu0 0.0
        %1315 = vmatprep.subr.mxu0 0.0
        %1316 = vmatpush1.msra.mxu0 0.0
        %1317 = vmatprep.subr.mxu0 0.0
        %1318 = vmatpush1.msra.mxu0 0.0
        %1319 = vmatprep.subr.mxu0 0.0
        %1320 = vmatpush1.msra.mxu0 0.0
        %1321 = vmatprep.subr.mxu0 0.0
        %1322 = vmatpush1.msra.mxu0 0.0
        %1323 = vmatprep.subr.mxu0 0.0
        %1324 = vmatpush1.msra.mxu0 0.0
        %1325 = vmatprep.subr.mxu0 0.0
        %1326 = vmatpush1.msra.mxu0 0.0
        %1327 = vmatprep.subr.mxu0 0.0
        %1328 = vmatpush1.msra.mxu0 0.0
        %1329 = vmatprep.subr.mxu0 0.0
        %1330 = vmatpush1.msra.mxu0 0.0
        %1331 = vmatprep.subr.mxu0 0.0
        %1332 = vmatpush1.msra.mxu0 0.0
        %1333 = vmatprep.subr.mxu0 0.0
        %1334 = vmatpush1.msra.mxu0 0.0
        %1335 = vmatprep.subr.mxu0 0.0
        %1336 = vmatpush1.msra.mxu0 0.0
        %1337 = vmatprep.subr.mxu0 0.0
        %1338 = vmatpush1.msra.mxu0 0.0
        %1339 = vmatprep.subr.mxu0 0.0
        %1340 = vmatpush1.msra.mxu0 0.0
        %1341 = vmatprep.mubr.f32.mxu0 0.0
        %1342 = vmatmul.mubr.f32.gmra.mrb[0].mxu0 %v1275
        %v1343 = vpop.f32.mrb[0].mxu0
        %v1344 = vadd.f32 0.0, %v1343
        %v1345 = vpop.f32.mrb[0].mxu0
        %1346 = vmatprep.mubr.f32.mxu0 0.0
        %1347 = vmatmul.mubr.f32.gmra.mrb[0].mxu0 %v1276
        %v1348 = vpop.f32.mrb[0].mxu0
        %v1349 = vadd.f32 0.0, %v1348
        %v1350 = vpop.f32.mrb[0].mxu0
        %1351 = vdwg.mxu0
        %1352 = vmatprep.subr.mxu0 0.0
        %1353 = vmatpush1.msra.mxu0 %v1344
        %1354 = vmatprep.subr.mxu0 0.0
        %1355 = vmatpush1.msra.mxu0 %v1349
        %1356 = vmatprep.subr.mxu0 0.0
        %1357 = vmatpush1.msra.mxu0 0.0
        %1358 = vmatprep.subr.mxu0 0.0
        %1359 = vmatpush1.msra.mxu0 0.0
        %1360 = vmatprep.subr.mxu0 0.0
        %1361 = vmatpush1.msra.mxu0 0.0
        %1362 = vmatprep.subr.mxu0 0.0
        %1363 = vmatpush1.msra.mxu0 0.0
        %1364 = vmatprep.subr.mxu0 0.0
        %1365 = vmatpush1.msra.mxu0 0.0
        %1366 = vmatprep.subr.mxu0 0.0
        %1367 = vmatpush1.msra.mxu0 0.0
        %1368 = vmatprep.subr.mxu0 0.0
        %1369 = vmatpush1.msra.mxu0 0.0
        %1370 = vmatprep.subr.mxu0 0.0
        %1371 = vmatpush1.msra.mxu0 0.0
        %1372 = vmatprep.subr.mxu0 0.0
        %1373 = vmatpush1.msra.mxu0 0.0
        %1374 = vmatprep.subr.mxu0 0.0
        %1375 = vmatpush1.msra.mxu0 0.0
        %1376 = vmatprep.subr.mxu0 0.0
        %1377 = vmatpush1.msra.mxu0 0.0
        %1378 = vmatprep.subr.mxu0 0.0
        %1379 = vmatpush1.msra.mxu0 0.0
        %1380 = vmatprep.subr.mxu0 0.0
        %1381 = vmatpush1.msra.mxu0 0.0
        %1382 = vmatprep.subr.mxu0 0.0
        %1383 = vmatpush1.msra.mxu0 0.0
        %1384 = vmatprep.subr.mxu0 0.0
        %1385 = vmatpush1.msra.mxu0 0.0
        %1386 = vmatprep.subr.mxu0 0.0
        %1387 = vmatpush1.msra.mxu0 0.0
        %1388 = vmatprep.subr.mxu0 0.0
        %1389 = vmatpush1.msra.mxu0 0.0
        %1390 = vmatprep.subr.mxu0 0.0
        %1391 = vmatpush1.msra.mxu0 0.0
        %1392 = vmatprep.subr.mxu0 0.0
        %1393 = vmatpush1.msra.mxu0 0.0
        %1394 = vmatprep.subr.mxu0 0.0
        %1395 = vmatpush1.msra.mxu0 0.0
        %1396 = vmatprep.subr.mxu0 0.0
        %1397 = vmatpush1.msra.mxu0 0.0
        %1398 = vmatprep.subr.mxu0 0.0
        %1399 = vmatpush1.msra.mxu0 0.0
        %1400 = vmatprep.subr.mxu0 0.0
        %1401 = vmatpush1.msra.mxu0 0.0
        %1402 = vmatprep.subr.mxu0 0.0
        %1403 = vmatpush1.msra.mxu0 0.0
        %1404 = vmatprep.subr.mxu0 0.0
        %1405 = vmatpush1.msra.mxu0 0.0
        %1406 = vmatprep.subr.mxu0 0.0
        %1407 = vmatpush1.msra.mxu0 0.0
        %1408 = vmatprep.subr.mxu0 0.0
        %1409 = vmatpush1.msra.mxu0 0.0
        %1410 = vmatprep.subr.mxu0 0.0
        %1411 = vmatpush1.msra.mxu0 0.0
        %1412 = vmatprep.subr.mxu0 0.0
        %1413 = vmatpush1.msra.mxu0 0.0
        %1414 = vmatprep.subr.mxu0 0.0
        %1415 = vmatpush1.msra.mxu0 0.0
        %1416 = vmatprep.mubr.f32.mxu0 0.0
        %1417 = vmatmul.mubr.f32.gmra.mrb[0].mxu0 %v1030
        %v1418 = vpop.f32.mrb[0].mxu0
        %v1419 = vadd.f32 0.0, %v1418
        %v1420 = vpop.f32.mrb[0].mxu0
        %1421 = vdwg.mxu0
        %1422 = vmatprep.subr.mxu0 0.0
        %1423 = vmatpush1.msra.mxu0 %v1419
        %1424 = vmatprep.subr.mxu0 0.0
        %1425 = vmatpush1.msra.mxu0 0.0
        %1426 = vmatprep.subr.mxu0 0.0
        %1427 = vmatpush1.msra.mxu0 0.0
        %1428 = vmatprep.subr.mxu0 0.0
        %1429 = vmatpush1.msra.mxu0 0.0
        %1430 = vmatprep.subr.mxu0 0.0
        %1431 = vmatpush1.msra.mxu0 0.0
        %1432 = vmatprep.subr.mxu0 0.0
        %1433 = vmatpush1.msra.mxu0 0.0
        %1434 = vmatprep.subr.mxu0 0.0
        %1435 = vmatpush1.msra.mxu0 0.0
        %1436 = vmatprep.subr.mxu0 0.0
        %1437 = vmatpush1.msra.mxu0 0.0
        %1438 = vmatprep.subr.mxu0 0.0
        %1439 = vmatpush1.msra.mxu0 0.0
        %1440 = vmatprep.subr.mxu0 0.0
        %1441 = vmatpush1.msra.mxu0 0.0
        %1442 = vmatprep.subr.mxu0 0.0
        %1443 = vmatpush1.msra.mxu0 0.0
        %1444 = vmatprep.subr.mxu0 0.0
        %1445 = vmatpush1.msra.mxu0 0.0
        %1446 = vmatprep.subr.mxu0 0.0
        %1447 = vmatpush1.msra.mxu0 0.0
        %1448 = vmatprep.subr.mxu0 0.0
        %1449 = vmatpush1.msra.mxu0 0.0
        %1450 = vmatprep.subr.mxu0 0.0
        %1451 = vmatpush1.msra.mxu0 0.0
        %1452 = vmatprep.subr.mxu0 0.0
        %1453 = vmatpush1.msra.mxu0 0.0
        %1454 = vmatprep.subr.mxu0 0.0
        %1455 = vmatpush1.msra.mxu0 0.0
        %1456 = vmatprep.subr.mxu0 0.0
        %1457 = vmatpush1.msra.mxu0 0.0
        %1458 = vmatprep.subr.mxu0 0.0
        %1459 = vmatpush1.msra.mxu0 0.0
        %1460 = vmatprep.subr.mxu0 0.0
        %1461 = vmatpush1.msra.mxu0 0.0
        %1462 = vmatprep.subr.mxu0 0.0
        %1463 = vmatpush1.msra.mxu0 0.0
        %1464 = vmatprep.subr.mxu0 0.0
        %1465 = vmatpush1.msra.mxu0 0.0
        %1466 = vmatprep.subr.mxu0 0.0
        %1467 = vmatpush1.msra.mxu0 0.0
        %1468 = vmatprep.subr.mxu0 0.0
        %1469 = vmatpush1.msra.mxu0 0.0
        %1470 = vmatprep.subr.mxu0 0.0
        %1471 = vmatpush1.msra.mxu0 0.0
        %1472 = vmatprep.subr.mxu0 0.0
        %1473 = vmatpush1.msra.mxu0 0.0
        %1474 = vmatprep.subr.mxu0 0.0
        %1475 = vmatpush1.msra.mxu0 0.0
        %1476 = vmatprep.subr.mxu0 0.0
        %1477 = vmatpush1.msra.mxu0 0.0
        %1478 = vmatprep.subr.mxu0 0.0
        %1479 = vmatpush1.msra.mxu0 0.0
        %1480 = vmatprep.subr.mxu0 0.0
        %1481 = vmatpush1.msra.mxu0 0.0
        %1482 = vmatprep.subr.mxu0 0.0
        %1483 = vmatpush1.msra.mxu0 0.0
        %1484 = vmatprep.subr.mxu0 0.0
        %1485 = vmatpush1.msra.mxu0 0.0
        %1486 = vmatprep.mubr.f32.mxu0 0.0
        %1487 = vmatmul.mubr.f32.gmra.mrb[0].mxu0 %v1106
        %v1488 = vpop.f32.mrb[0].mxu0
        %v1489 = vadd.f32 0.0, %v1488
        %v1490 = vpop.f32.mrb[0].mxu0
        %1491 = vmatprep.mubr.f32.mxu0 0.0
        %1492 = vmatmul.mubr.f32.gmra.mrb[0].mxu0 %v1109
        %v1493 = vpop.f32.mrb[0].mxu0
        %v1494 = vadd.f32 0.0, %v1493
        %v1495 = vpop.f32.mrb[0].mxu0
        %1496 = vdwg.mxu0
        %v1498 = vsel %vm1187, %v1489, 0
        %v1501 = vsel %vm1187, %v1494, 0
        %1503 = vmatprep.subr.mxu0 0.0
        %1504 = vmatpush1.msra.mxu0 %v1196
        %1505 = vmatprep.subr.mxu0 0.0
        %1506 = vmatpush1.msra.mxu0 0.0
        %1507 = vmatprep.subr.mxu0 0.0
        %1508 = vmatpush1.msra.mxu0 0.0
        %1509 = vmatprep.subr.mxu0 0.0
        %1510 = vmatpush1.msra.mxu0 0.0
        %1511 = vmatprep.subr.mxu0 0.0
        %1512 = vmatpush1.msra.mxu0 0.0
        %1513 = vmatprep.subr.mxu0 0.0
        %1514 = vmatpush1.msra.mxu0 0.0
        %1515 = vmatprep.subr.mxu0 0.0
        %1516 = vmatpush1.msra.mxu0 0.0
        %1517 = vmatprep.subr.mxu0 0.0
        %1518 = vmatpush1.msra.mxu0 0.0
        %1519 = vmatprep.subr.mxu0 0.0
        %1520 = vmatpush1.msra.mxu0 0.0
        %1521 = vmatprep.subr.mxu0 0.0
        %1522 = vmatpush1.msra.mxu0 0.0
        %1523 = vmatprep.subr.mxu0 0.0
        %1524 = vmatpush1.msra.mxu0 0.0
        %1525 = vmatprep.subr.mxu0 0.0
        %1526 = vmatpush1.msra.mxu0 0.0
        %1527 = vmatprep.subr.mxu0 0.0
        %1528 = vmatpush1.msra.mxu0 0.0
        %1529 = vmatprep.subr.mxu0 0.0
        %1530 = vmatpush1.msra.mxu0 0.0
        %1531 = vmatprep.subr.mxu0 0.0
        %1532 = vmatpush1.msra.mxu0 0.0
        %1533 = vmatprep.subr.mxu0 0.0
        %1534 = vmatpush1.msra.mxu0 0.0
        %1535 = vmatprep.subr.mxu0 0.0
        %1536 = vmatpush1.msra.mxu0 0.0
        %1537 = vmatprep.subr.mxu0 0.0
        %1538 = vmatpush1.msra.mxu0 0.0
        %1539 = vmatprep.subr.mxu0 0.0
        %1540 = vmatpush1.msra.mxu0 0.0
        %1541 = vmatprep.subr.mxu0 0.0
        %1542 = vmatpush1.msra.mxu0 0.0
        %1543 = vmatprep.subr.mxu0 0.0
        %1544 = vmatpush1.msra.mxu0 0.0
        %1545 = vmatprep.subr.mxu0 0.0
        %1546 = vmatpush1.msra.mxu0 0.0
        %1547 = vmatprep.subr.mxu0 0.0
        %1548 = vmatpush1.msra.mxu0 0.0
        %1549 = vmatprep.subr.mxu0 0.0
        %1550 = vmatpush1.msra.mxu0 0.0
        %1551 = vmatprep.subr.mxu0 0.0
        %1552 = vmatpush1.msra.mxu0 0.0
        %1553 = vmatprep.subr.mxu0 0.0
        %1554 = vmatpush1.msra.mxu0 0.0
        %1555 = vmatprep.subr.mxu0 0.0
        %1556 = vmatpush1.msra.mxu0 0.0
        %1557 = vmatprep.subr.mxu0 0.0
        %1558 = vmatpush1.msra.mxu0 0.0
        %1559 = vmatprep.subr.mxu0 0.0
        %1560 = vmatpush1.msra.mxu0 0.0
        %1561 = vmatprep.subr.mxu0 0.0
        %1562 = vmatpush1.msra.mxu0 0.0
        %1563 = vmatprep.subr.mxu0 0.0
        %1564 = vmatpush1.msra.mxu0 0.0
        %1565 = vmatprep.subr.mxu0 0.0
        %1566 = vmatpush1.msra.mxu0 0.0
        %1567 = vmatprep.mubr.f32.mxu0 0.0
        %1568 = vmatmul.mubr.f32.gmra.mrb[0].mxu0 %v1498
        %v1569 = vpop.f32.mrb[0].mxu0
        %v1570 = vadd.f32 1e-05, %v1569
        %v1571 = vpop.f32.mrb[0].mxu0
        %1572 = vmatprep.mubr.f32.mxu0 0.0
        %1573 = vmatmul.mubr.f32.gmra.mrb[0].mxu0 %v1501
        %v1574 = vpop.f32.mrb[0].mxu0
        %v1575 = vadd.f32 1e-05, %v1574
        %v1576 = vpop.f32.mrb[0].mxu0
        %1577 = vdwg.mxu0
        %v1578 = vrsqrt.pop %v1570
        %v1579 = vrsqrt.pop %v1575
        %v1580 = vmul.f32 %v1273, %v1578
        %v1581 = vmul.f32 %v1274, %v1579
        %1582 = vst [vmem:[#allocation2] sm:$0xff] %v925
        %1583 = vst [vmem:[#allocation2 + $0x8] sm:$0xff] %v930
        %1584 = vst [vmem:[#allocation3] sm:$0xff] %v1580
        %1585 = vst [vmem:[#allocation3 + $0x8] sm:$0xff] %v1581
        %v1586 = vld [vmem:[#allocation4] sm:$0xff]
        %v1587 = vld [vmem:[#allocation4 + $0x8] sm:$0xff]
        %v1588 = vadd.f32 %v1586, %v1580
        %v1589 = vadd.f32 %v1587, %v1581
        %1590 = vst [vmem:[#allocation4] sm:$0xff] %v1588
        %1591 = vst [vmem:[#allocation4 + $0x8] sm:$0xff] %v1589
        %p1592 = scmp.eq.s32.totalorder %s35, 2
        // Predicated region
        $region61: #{tpu_custom_call.1} parent=55 // pred_check
          %p1593 = pneg %p1592
        $region62: #{tpu_custom_call.1} parent=55 // pred_check_branch
          %1595 = sbr.rel (%p1593) target = $region64
        $region63: #{tpu_custom_call.1} parent=55 // pred_region
          %v1596 = vld [vmem:[#allocation4] sm:$0xff]
          %v1597 = vld [vmem:[#allocation4 + $0x8] sm:$0xff]
          %v1598 = vld [vmem:[%s8] sm:$0xff]
          %v1599 = vld [vmem:[%s8 + $0x8] sm:$0xff]
          %v1600 = vld [vmem:[%s8 + $0x10] sm:$0xff]
          %v1601 = vld [vmem:[%s8 + $0x18] sm:$0xff]
          %v1602 = vld [vmem:[%s8 + $0x20] sm:$0xff]
          %v1603 = vld [vmem:[%s8 + $0x28] sm:$0xff]
          %v1604 = vld [vmem:[%s8 + $0x30] sm:$0xff]
          %v1605 = vld [vmem:[%s8 + $0x38] sm:$0xff]
          %v1606 = vld [vmem:[%s8 + $0x40] sm:$0xff]
          %v1607 = vld [vmem:[%s8 + $0x48] sm:$0xff]
          %v1608 = vld [vmem:[%s8 + $0x50] sm:$0xff]
          %v1609 = vld [vmem:[%s8 + $0x58] sm:$0xff]
          %v1610 = vld [vmem:[%s8 + $0x60] sm:$0xff]
          %v1611 = vld [vmem:[%s8 + $0x68] sm:$0xff]
          %v1612 = vld [vmem:[%s8 + $0x70] sm:$0xff]
          %v1613 = vld [vmem:[%s8 + $0x78] sm:$0xff]
          %1614 = vmatprep.subr.mxu0 0.0
          %1615 = vmatpush1.msra.mxu0 %v1598
          %1616 = vmatprep.subr.mxu0 0.0
          %1617 = vmatpush1.msra.mxu0 %v1599
          %1618 = vmatprep.subr.mxu0 0.0
          %1619 = vmatpush1.msra.mxu0 %v1600
          %1620 = vmatprep.subr.mxu0 0.0
          %1621 = vmatpush1.msra.mxu0 %v1601
          %1622 = vmatprep.subr.mxu0 0.0
          %1623 = vmatpush1.msra.mxu0 %v1602
          %1624 = vmatprep.subr.mxu0 0.0
          %1625 = vmatpush1.msra.mxu0 %v1603
          %1626 = vmatprep.subr.mxu0 0.0
          %1627 = vmatpush1.msra.mxu0 %v1604
          %1628 = vmatprep.subr.mxu0 0.0
          %1629 = vmatpush1.msra.mxu0 %v1605
          %1630 = vmatprep.subr.mxu0 0.0
          %1631 = vmatpush1.msra.mxu0 %v1606
          %1632 = vmatprep.subr.mxu0 0.0
          %1633 = vmatpush1.msra.mxu0 %v1607
          %1634 = vmatprep.subr.mxu0 0.0
          %1635 = vmatpush1.msra.mxu0 %v1608
          %1636 = vmatprep.subr.mxu0 0.0
          %1637 = vmatpush1.msra.mxu0 %v1609
          %1638 = vmatprep.subr.mxu0 0.0
          %1639 = vmatpush1.msra.mxu0 %v1610
          %1640 = vmatprep.subr.mxu0 0.0
          %1641 = vmatpush1.msra.mxu0 %v1611
          %1642 = vmatprep.subr.mxu0 0.0
          %1643 = vmatpush1.msra.mxu0 %v1612
          %1644 = vmatprep.subr.mxu0 0.0
          %1645 = vmatpush1.msra.mxu0 %v1613
          %1646 = vmatprep.subr.mxu0 0.0
          %1647 = vmatpush1.msra.mxu0 0.0
          %1648 = vmatprep.subr.mxu0 0.0
          %1649 = vmatpush1.msra.mxu0 0.0
          %1650 = vmatprep.subr.mxu0 0.0
          %1651 = vmatpush1.msra.mxu0 0.0
          %1652 = vmatprep.subr.mxu0 0.0
          %1653 = vmatpush1.msra.mxu0 0.0
          %1654 = vmatprep.subr.mxu0 0.0
          %1655 = vmatpush1.msra.mxu0 0.0
          %1656 = vmatprep.subr.mxu0 0.0
          %1657 = vmatpush1.msra.mxu0 0.0
          %1658 = vmatprep.subr.mxu0 0.0
          %1659 = vmatpush1.msra.mxu0 0.0
          %1660 = vmatprep.subr.mxu0 0.0
          %1661 = vmatpush1.msra.mxu0 0.0
          %1662 = vmatprep.subr.mxu0 0.0
          %1663 = vmatpush1.msra.mxu0 0.0
          %1664 = vmatprep.subr.mxu0 0.0
          %1665 = vmatpush1.msra.mxu0 0.0
          %1666 = vmatprep.subr.mxu0 0.0
          %1667 = vmatpush1.msra.mxu0 0.0
          %1668 = vmatprep.subr.mxu0 0.0
          %1669 = vmatpush1.msra.mxu0 0.0
          %1670 = vmatprep.subr.mxu0 0.0
          %1671 = vmatpush1.msra.mxu0 0.0
          %1672 = vmatprep.subr.mxu0 0.0
          %1673 = vmatpush1.msra.mxu0 0.0
          %1674 = vmatprep.subr.mxu0 0.0
          %1675 = vmatpush1.msra.mxu0 0.0
          %1676 = vmatprep.subr.mxu0 0.0
          %1677 = vmatpush1.msra.mxu0 0.0
          %1678 = vmatprep.mubr.f32.mxu0 0.0
          %1679 = vmatmul.mubr.f32.gmra.mrb[0].mxu0 %v1596
          %v1680 = vpop.f32.mrb[0].mxu0
          %v1681 = vadd.f32 0.0, %v1680
          %v1682 = vpop.f32.mrb[0].mxu0
          %1683 = vmatprep.mubr.f32.mxu0 0.0
          %1684 = vmatmul.mubr.f32.gmra.mrb[0].mxu0 %v1597
          %v1685 = vpop.f32.mrb[0].mxu0
          %v1686 = vadd.f32 0.0, %v1685
          %v1687 = vpop.f32.mrb[0].mxu0
          %1688 = vdwg.mxu0
          %v1689 = vld [vmem:[%s6] sm:$0xff]
          %v1691 = vsel %vm851, %v1689, 0
          %1693 = vmatprep.subr.mxu0 0.0
          %1694 = vmatpush1.msra.mxu0 %v1681
          %1695 = vmatprep.subr.mxu0 0.0
          %1696 = vmatpush1.msra.mxu0 %v1686
          %1697 = vmatprep.subr.mxu0 0.0
          %1698 = vmatpush1.msra.mxu0 0.0
          %1699 = vmatprep.subr.mxu0 0.0
          %1700 = vmatpush1.msra.mxu0 0.0
          %1701 = vmatprep.subr.mxu0 0.0
          %1702 = vmatpush1.msra.mxu0 0.0
          %1703 = vmatprep.subr.mxu0 0.0
          %1704 = vmatpush1.msra.mxu0 0.0
          %1705 = vmatprep.subr.mxu0 0.0
          %1706 = vmatpush1.msra.mxu0 0.0
          %1707 = vmatprep.subr.mxu0 0.0
          %1708 = vmatpush1.msra.mxu0 0.0
          %1709 = vmatprep.subr.mxu0 0.0
          %1710 = vmatpush1.msra.mxu0 0.0
          %1711 = vmatprep.subr.mxu0 0.0
          %1712 = vmatpush1.msra.mxu0 0.0
          %1713 = vmatprep.subr.mxu0 0.0
          %1714 = vmatpush1.msra.mxu0 0.0
          %1715 = vmatprep.subr.mxu0 0.0
          %1716 = vmatpush1.msra.mxu0 0.0
          %1717 = vmatprep.subr.mxu0 0.0
          %1718 = vmatpush1.msra.mxu0 0.0
          %1719 = vmatprep.subr.mxu0 0.0
          %1720 = vmatpush1.msra.mxu0 0.0
          %1721 = vmatprep.subr.mxu0 0.0
          %1722 = vmatpush1.msra.mxu0 0.0
          %1723 = vmatprep.subr.mxu0 0.0
          %1724 = vmatpush1.msra.mxu0 0.0
          %1725 = vmatprep.subr.mxu0 0.0
          %1726 = vmatpush1.msra.mxu0 0.0
          %1727 = vmatprep.subr.mxu0 0.0
          %1728 = vmatpush1.msra.mxu0 0.0
          %1729 = vmatprep.subr.mxu0 0.0
          %1730 = vmatpush1.msra.mxu0 0.0
          %1731 = vmatprep.subr.mxu0 0.0
          %1732 = vmatpush1.msra.mxu0 0.0
          %1733 = vmatprep.subr.mxu0 0.0
          %1734 = vmatpush1.msra.mxu0 0.0
          %1735 = vmatprep.subr.mxu0 0.0
          %1736 = vmatpush1.msra.mxu0 0.0
          %1737 = vmatprep.subr.mxu0 0.0
          %1738 = vmatpush1.msra.mxu0 0.0
          %1739 = vmatprep.subr.mxu0 0.0
          %1740 = vmatpush1.msra.mxu0 0.0
          %1741 = vmatprep.subr.mxu0 0.0
          %1742 = vmatpush1.msra.mxu0 0.0
          %1743 = vmatprep.subr.mxu0 0.0
          %1744 = vmatpush1.msra.mxu0 0.0
          %1745 = vmatprep.subr.mxu0 0.0
          %1746 = vmatpush1.msra.mxu0 0.0
          %1747 = vmatprep.subr.mxu0 0.0
          %1748 = vmatpush1.msra.mxu0 0.0
          %1749 = vmatprep.subr.mxu0 0.0
          %1750 = vmatpush1.msra.mxu0 0.0
          %1751 = vmatprep.subr.mxu0 0.0
          %1752 = vmatpush1.msra.mxu0 0.0
          %1753 = vmatprep.subr.mxu0 0.0
          %1754 = vmatpush1.msra.mxu0 0.0
          %1755 = vmatprep.subr.mxu0 0.0
          %1756 = vmatpush1.msra.mxu0 0.0
          %1757 = vmatprep.mubr.f32.mxu0 0.0
          %1758 = vmatmul.mubr.f32.gmra.mrb[0].mxu0 %v1691
          %v1759 = vpop.f32.mrb[0].mxu0
          %v1760 = vadd.f32 0.0, %v1759
          %v1761 = vpop.f32.mrb[0].mxu0
          %1762 = vdwg.mxu0
          %v1763 = vld [vmem:[%s7] sm:$0xff]
          %v1764 = vld [vmem:[%s7 + $0x8] sm:$0xff]
          %v1766 = vsel %vm1104, %v1763, 0
          %v1769 = vsel %vm1104, %v1764, 0
          %1771 = vmatprep.subr.mxu0 0.0
          %1772 = vmatpush1.msra.mxu0 %v1760
          %1773 = vmatprep.subr.mxu0 0.0
          %1774 = vmatpush1.msra.mxu0 0.0
          %1775 = vmatprep.subr.mxu0 0.0
          %1776 = vmatpush1.msra.mxu0 0.0
          %1777 = vmatprep.subr.mxu0 0.0
          %1778 = vmatpush1.msra.mxu0 0.0
          %1779 = vmatprep.subr.mxu0 0.0
          %1780 = vmatpush1.msra.mxu0 0.0
          %1781 = vmatprep.subr.mxu0 0.0
          %1782 = vmatpush1.msra.mxu0 0.0
          %1783 = vmatprep.subr.mxu0 0.0
          %1784 = vmatpush1.msra.mxu0 0.0
          %1785 = vmatprep.subr.mxu0 0.0
          %1786 = vmatpush1.msra.mxu0 0.0
          %1787 = vmatprep.subr.mxu0 0.0
          %1788 = vmatpush1.msra.mxu0 0.0
          %1789 = vmatprep.subr.mxu0 0.0
          %1790 = vmatpush1.msra.mxu0 0.0
          %1791 = vmatprep.subr.mxu0 0.0
          %1792 = vmatpush1.msra.mxu0 0.0
          %1793 = vmatprep.subr.mxu0 0.0
          %1794 = vmatpush1.msra.mxu0 0.0
          %1795 = vmatprep.subr.mxu0 0.0
          %1796 = vmatpush1.msra.mxu0 0.0
          %1797 = vmatprep.subr.mxu0 0.0
          %1798 = vmatpush1.msra.mxu0 0.0
          %1799 = vmatprep.subr.mxu0 0.0
          %1800 = vmatpush1.msra.mxu0 0.0
          %1801 = vmatprep.subr.mxu0 0.0
          %1802 = vmatpush1.msra.mxu0 0.0
          %1803 = vmatprep.subr.mxu0 0.0
          %1804 = vmatpush1.msra.mxu0 0.0
          %1805 = vmatprep.subr.mxu0 0.0
          %1806 = vmatpush1.msra.mxu0 0.0
          %1807 = vmatprep.subr.mxu0 0.0
          %1808 = vmatpush1.msra.mxu0 0.0
          %1809 = vmatprep.subr.mxu0 0.0
          %1810 = vmatpush1.msra.mxu0 0.0
          %1811 = vmatprep.subr.mxu0 0.0
          %1812 = vmatpush1.msra.mxu0 0.0
          %1813 = vmatprep.subr.mxu0 0.0
          %1814 = vmatpush1.msra.mxu0 0.0
          %1815 = vmatprep.subr.mxu0 0.0
          %1816 = vmatpush1.msra.mxu0 0.0
          %1817 = vmatprep.subr.mxu0 0.0
          %1818 = vmatpush1.msra.mxu0 0.0
          %1819 = vmatprep.subr.mxu0 0.0
          %1820 = vmatpush1.msra.mxu0 0.0
          %1821 = vmatprep.subr.mxu0 0.0
          %1822 = vmatpush1.msra.mxu0 0.0
          %1823 = vmatprep.subr.mxu0 0.0
          %1824 = vmatpush1.msra.mxu0 0.0
          %1825 = vmatprep.subr.mxu0 0.0
          %1826 = vmatpush1.msra.mxu0 0.0
          %1827 = vmatprep.subr.mxu0 0.0
          %1828 = vmatpush1.msra.mxu0 0.0
          %1829 = vmatprep.subr.mxu0 0.0
          %1830 = vmatpush1.msra.mxu0 0.0
          %1831 = vmatprep.subr.mxu0 0.0
          %1832 = vmatpush1.msra.mxu0 0.0
          %1833 = vmatprep.subr.mxu0 0.0
          %1834 = vmatpush1.msra.mxu0 0.0
          %1835 = vmatprep.mubr.f32.mxu0 0.0
          %1836 = vmatmul.mubr.f32.gmra.mrb[0].mxu0 %v1766
          %v1837 = vpop.f32.mrb[0].mxu0
          %v1838 = vadd.f32 0.0, %v1837
          %v1839 = vpop.f32.mrb[0].mxu0
          %1840 = vmatprep.mubr.f32.mxu0 0.0
          %1841 = vmatmul.mubr.f32.gmra.mrb[0].mxu0 %v1769
          %v1842 = vpop.f32.mrb[0].mxu0
          %v1843 = vadd.f32 0.0, %v1842
          %v1844 = vpop.f32.mrb[0].mxu0
          %1845 = vdwg.mxu0
          %v1846 = vld [vmem:[%s9] sm:$0x1]
          %v1848 = vsel %vm1187, %v1838, 0
          %v1851 = vsel %vm1187, %v1843, 0
          %v1854 = vsel %vm1194, %v1846, 0
          %1856 = vmatprep.subr.mxu0 0.0
          %1857 = vmatpush1.msra.mxu0 %v1854
          %1858 = vmatprep.subr.mxu0 0.0
          %1859 = vmatpush1.msra.mxu0 0.0
          %1860 = vmatprep.subr.mxu0 0.0
          %1861 = vmatpush1.msra.mxu0 0.0
          %1862 = vmatprep.subr.mxu0 0.0
          %1863 = vmatpush1.msra.mxu0 0.0
          %1864 = vmatprep.subr.mxu0 0.0
          %1865 = vmatpush1.msra.mxu0 0.0
          %1866 = vmatprep.subr.mxu0 0.0
          %1867 = vmatpush1.msra.mxu0 0.0
          %1868 = vmatprep.subr.mxu0 0.0
          %1869 = vmatpush1.msra.mxu0 0.0
          %1870 = vmatprep.subr.mxu0 0.0
          %1871 = vmatpush1.msra.mxu0 0.0
          %1872 = vmatprep.subr.mxu0 0.0
          %1873 = vmatpush1.msra.mxu0 0.0
          %1874 = vmatprep.subr.mxu0 0.0
          %1875 = vmatpush1.msra.mxu0 0.0
          %1876 = vmatprep.subr.mxu0 0.0
          %1877 = vmatpush1.msra.mxu0 0.0
          %1878 = vmatprep.subr.mxu0 0.0
          %1879 = vmatpush1.msra.mxu0 0.0
          %1880 = vmatprep.subr.mxu0 0.0
          %1881 = vmatpush1.msra.mxu0 0.0
          %1882 = vmatprep.subr.mxu0 0.0
          %1883 = vmatpush1.msra.mxu0 0.0
          %1884 = vmatprep.subr.mxu0 0.0
          %1885 = vmatpush1.msra.mxu0 0.0
          %1886 = vmatprep.subr.mxu0 0.0
          %1887 = vmatpush1.msra.mxu0 0.0
          %1888 = vmatprep.subr.mxu0 0.0
          %1889 = vmatpush1.msra.mxu0 0.0
          %1890 = vmatprep.subr.mxu0 0.0
          %1891 = vmatpush1.msra.mxu0 0.0
          %1892 = vmatprep.subr.mxu0 0.0
          %1893 = vmatpush1.msra.mxu0 0.0
          %1894 = vmatprep.subr.mxu0 0.0
          %1895 = vmatpush1.msra.mxu0 0.0
          %1896 = vmatprep.subr.mxu0 0.0
          %1897 = vmatpush1.msra.mxu0 0.0
          %1898 = vmatprep.subr.mxu0 0.0
          %1899 = vmatpush1.msra.mxu0 0.0
          %1900 = vmatprep.subr.mxu0 0.0
          %1901 = vmatpush1.msra.mxu0 0.0
          %1902 = vmatprep.subr.mxu0 0.0
          %1903 = vmatpush1.msra.mxu0 0.0
          %1904 = vmatprep.subr.mxu0 0.0
          %1905 = vmatpush1.msra.mxu0 0.0
          %1906 = vmatprep.subr.mxu0 0.0
          %1907 = vmatpush1.msra.mxu0 0.0
          %1908 = vmatprep.subr.mxu0 0.0
          %1909 = vmatpush1.msra.mxu0 0.0
          %1910 = vmatprep.subr.mxu0 0.0
          %1911 = vmatpush1.msra.mxu0 0.0
          %1912 = vmatprep.subr.mxu0 0.0
          %1913 = vmatpush1.msra.mxu0 0.0
          %1914 = vmatprep.subr.mxu0 0.0
          %1915 = vmatpush1.msra.mxu0 0.0
          %1916 = vmatprep.subr.mxu0 0.0
          %1917 = vmatpush1.msra.mxu0 0.0
          %1918 = vmatprep.subr.mxu0 0.0
          %1919 = vmatpush1.msra.mxu0 0.0
          %1920 = vmatprep.mubr.f32.mxu0 0.0
          %1921 = vmatmul.mubr.f32.gmra.mrb[0].mxu0 %v1848
          %v1922 = vpop.f32.mrb[0].mxu0
          %v1923 = vadd.f32 0.0, %v1922
          %v1924 = vpop.f32.mrb[0].mxu0
          %1925 = vmatprep.mubr.f32.mxu0 0.0
          %1926 = vmatmul.mubr.f32.gmra.mrb[0].mxu0 %v1851
          %v1927 = vpop.f32.mrb[0].mxu0
          %v1928 = vadd.f32 0.0, %v1927
          %v1929 = vpop.f32.mrb[0].mxu0
          %1930 = vdwg.mxu0
          %v1931 = vsub.f32 %v1596, %v1923
          %v1932 = vsub.f32 %v1597, %v1928
          %v1933 = vmul.f32 %v1931, %v1931
          %v1934 = vmul.f32 %v1932, %v1932
          %1935 = vmatprep.subr.mxu0 0.0
          %1936 = vmatpush1.msra.mxu0 %v1598
          %1937 = vmatprep.subr.mxu0 0.0
          %1938 = vmatpush1.msra.mxu0 %v1599
          %1939 = vmatprep.subr.mxu0 0.0
          %1940 = vmatpush1.msra.mxu0 %v1600
          %1941 = vmatprep.subr.mxu0 0.0
          %1942 = vmatpush1.msra.mxu0 %v1601
          %1943 = vmatprep.subr.mxu0 0.0
          %1944 = vmatpush1.msra.mxu0 %v1602
          %1945 = vmatprep.subr.mxu0 0.0
          %1946 = vmatpush1.msra.mxu0 %v1603
          %1947 = vmatprep.subr.mxu0 0.0
          %1948 = vmatpush1.msra.mxu0 %v1604
          %1949 = vmatprep.subr.mxu0 0.0
          %1950 = vmatpush1.msra.mxu0 %v1605
          %1951 = vmatprep.subr.mxu0 0.0
          %1952 = vmatpush1.msra.mxu0 %v1606
          %1953 = vmatprep.subr.mxu0 0.0
          %1954 = vmatpush1.msra.mxu0 %v1607
          %1955 = vmatprep.subr.mxu0 0.0
          %1956 = vmatpush1.msra.mxu0 %v1608
          %1957 = vmatprep.subr.mxu0 0.0
          %1958 = vmatpush1.msra.mxu0 %v1609
          %1959 = vmatprep.subr.mxu0 0.0
          %1960 = vmatpush1.msra.mxu0 %v1610
          %1961 = vmatprep.subr.mxu0 0.0
          %1962 = vmatpush1.msra.mxu0 %v1611
          %1963 = vmatprep.subr.mxu0 0.0
          %1964 = vmatpush1.msra.mxu0 %v1612
          %1965 = vmatprep.subr.mxu0 0.0
          %1966 = vmatpush1.msra.mxu0 %v1613
          %1967 = vmatprep.subr.mxu0 0.0
          %1968 = vmatpush1.msra.mxu0 0.0
          %1969 = vmatprep.subr.mxu0 0.0
          %1970 = vmatpush1.msra.mxu0 0.0
          %1971 = vmatprep.subr.mxu0 0.0
          %1972 = vmatpush1.msra.mxu0 0.0
          %1973 = vmatprep.subr.mxu0 0.0
          %1974 = vmatpush1.msra.mxu0 0.0
          %1975 = vmatprep.subr.mxu0 0.0
          %1976 = vmatpush1.msra.mxu0 0.0
          %1977 = vmatprep.subr.mxu0 0.0
          %1978 = vmatpush1.msra.mxu0 0.0
          %1979 = vmatprep.subr.mxu0 0.0
          %1980 = vmatpush1.msra.mxu0 0.0
          %1981 = vmatprep.subr.mxu0 0.0
          %1982 = vmatpush1.msra.mxu0 0.0
          %1983 = vmatprep.subr.mxu0 0.0
          %1984 = vmatpush1.msra.mxu0 0.0
          %1985 = vmatprep.subr.mxu0 0.0
          %1986 = vmatpush1.msra.mxu0 0.0
          %1987 = vmatprep.subr.mxu0 0.0
          %1988 = vmatpush1.msra.mxu0 0.0
          %1989 = vmatprep.subr.mxu0 0.0
          %1990 = vmatpush1.msra.mxu0 0.0
          %1991 = vmatprep.subr.mxu0 0.0
          %1992 = vmatpush1.msra.mxu0 0.0
          %1993 = vmatprep.subr.mxu0 0.0
          %1994 = vmatpush1.msra.mxu0 0.0
          %1995 = vmatprep.subr.mxu0 0.0
          %1996 = vmatpush1.msra.mxu0 0.0
          %1997 = vmatprep.subr.mxu0 0.0
          %1998 = vmatpush1.msra.mxu0 0.0
          %1999 = vmatprep.mubr.f32.mxu0 0.0
          %2000 = vmatmul.mubr.f32.gmra.mrb[0].mxu0 %v1933
          %v2001 = vpop.f32.mrb[0].mxu0
          %v2002 = vadd.f32 0.0, %v2001
          %v2003 = vpop.f32.mrb[0].mxu0
          %2004 = vmatprep.mubr.f32.mxu0 0.0
          %2005 = vmatmul.mubr.f32.gmra.mrb[0].mxu0 %v1934
          %v2006 = vpop.f32.mrb[0].mxu0
          %v2007 = vadd.f32 0.0, %v2006
          %v2008 = vpop.f32.mrb[0].mxu0
          %2009 = vdwg.mxu0
          %2010 = vmatprep.subr.mxu0 0.0
          %2011 = vmatpush1.msra.mxu0 %v2002
          %2012 = vmatprep.subr.mxu0 0.0
          %2013 = vmatpush1.msra.mxu0 %v2007
          %2014 = vmatprep.subr.mxu0 0.0
          %2015 = vmatpush1.msra.mxu0 0.0
          %2016 = vmatprep.subr.mxu0 0.0
          %2017 = vmatpush1.msra.mxu0 0.0
          %2018 = vmatprep.subr.mxu0 0.0
          %2019 = vmatpush1.msra.mxu0 0.0
          %2020 = vmatprep.subr.mxu0 0.0
          %2021 = vmatpush1.msra.mxu0 0.0
          %2022 = vmatprep.subr.mxu0 0.0
          %2023 = vmatpush1.msra.mxu0 0.0
          %2024 = vmatprep.subr.mxu0 0.0
          %2025 = vmatpush1.msra.mxu0 0.0
          %2026 = vmatprep.subr.mxu0 0.0
          %2027 = vmatpush1.msra.mxu0 0.0
          %2028 = vmatprep.subr.mxu0 0.0
          %2029 = vmatpush1.msra.mxu0 0.0
          %2030 = vmatprep.subr.mxu0 0.0
          %2031 = vmatpush1.msra.mxu0 0.0
          %2032 = vmatprep.subr.mxu0 0.0
          %2033 = vmatpush1.msra.mxu0 0.0
          %2034 = vmatprep.subr.mxu0 0.0
          %2035 = vmatpush1.msra.mxu0 0.0
          %2036 = vmatprep.subr.mxu0 0.0
          %2037 = vmatpush1.msra.mxu0 0.0
          %2038 = vmatprep.subr.mxu0 0.0
          %2039 = vmatpush1.msra.mxu0 0.0
          %2040 = vmatprep.subr.mxu0 0.0
          %2041 = vmatpush1.msra.mxu0 0.0
          %2042 = vmatprep.subr.mxu0 0.0
          %2043 = vmatpush1.msra.mxu0 0.0
          %2044 = vmatprep.subr.mxu0 0.0
          %2045 = vmatpush1.msra.mxu0 0.0
          %2046 = vmatprep.subr.mxu0 0.0
          %2047 = vmatpush1.msra.mxu0 0.0
          %2048 = vmatprep.subr.mxu0 0.0
          %2049 = vmatpush1.msra.mxu0 0.0
          %2050 = vmatprep.subr.mxu0 0.0
          %2051 = vmatpush1.msra.mxu0 0.0
          %2052 = vmatprep.subr.mxu0 0.0
          %2053 = vmatpush1.msra.mxu0 0.0
          %2054 = vmatprep.subr.mxu0 0.0
          %2055 = vmatpush1.msra.mxu0 0.0
          %2056 = vmatprep.subr.mxu0 0.0
          %2057 = vmatpush1.msra.mxu0 0.0
          %2058 = vmatprep.subr.mxu0 0.0
          %2059 = vmatpush1.msra.mxu0 0.0
          %2060 = vmatprep.subr.mxu0 0.0
          %2061 = vmatpush1.msra.mxu0 0.0
          %2062 = vmatprep.subr.mxu0 0.0
          %2063 = vmatpush1.msra.mxu0 0.0
          %2064 = vmatprep.subr.mxu0 0.0
          %2065 = vmatpush1.msra.mxu0 0.0
          %2066 = vmatprep.subr.mxu0 0.0
          %2067 = vmatpush1.msra.mxu0 0.0
          %2068 = vmatprep.subr.mxu0 0.0
          %2069 = vmatpush1.msra.mxu0 0.0
          %2070 = vmatprep.subr.mxu0 0.0
          %2071 = vmatpush1.msra.mxu0 0.0
          %2072 = vmatprep.subr.mxu0 0.0
          %2073 = vmatpush1.msra.mxu0 0.0
          %2074 = vmatprep.mubr.f32.mxu0 0.0
          %2075 = vmatmul.mubr.f32.gmra.mrb[0].mxu0 %v1691
          %v2076 = vpop.f32.mrb[0].mxu0
          %v2077 = vadd.f32 0.0, %v2076
          %v2078 = vpop.f32.mrb[0].mxu0
          %2079 = vdwg.mxu0
          %2080 = vmatprep.subr.mxu0 0.0
          %2081 = vmatpush1.msra.mxu0 %v2077
          %2082 = vmatprep.subr.mxu0 0.0
          %2083 = vmatpush1.msra.mxu0 0.0
          %2084 = vmatprep.subr.mxu0 0.0
          %2085 = vmatpush1.msra.mxu0 0.0
          %2086 = vmatprep.subr.mxu0 0.0
          %2087 = vmatpush1.msra.mxu0 0.0
          %2088 = vmatprep.subr.mxu0 0.0
          %2089 = vmatpush1.msra.mxu0 0.0
          %2090 = vmatprep.subr.mxu0 0.0
          %2091 = vmatpush1.msra.mxu0 0.0
          %2092 = vmatprep.subr.mxu0 0.0
          %2093 = vmatpush1.msra.mxu0 0.0
          %2094 = vmatprep.subr.mxu0 0.0
          %2095 = vmatpush1.msra.mxu0 0.0
          %2096 = vmatprep.subr.mxu0 0.0
          %2097 = vmatpush1.msra.mxu0 0.0
          %2098 = vmatprep.subr.mxu0 0.0
          %2099 = vmatpush1.msra.mxu0 0.0
          %2100 = vmatprep.subr.mxu0 0.0
          %2101 = vmatpush1.msra.mxu0 0.0
          %2102 = vmatprep.subr.mxu0 0.0
          %2103 = vmatpush1.msra.mxu0 0.0
          %2104 = vmatprep.subr.mxu0 0.0
          %2105 = vmatpush1.msra.mxu0 0.0
          %2106 = vmatprep.subr.mxu0 0.0
          %2107 = vmatpush1.msra.mxu0 0.0
          %2108 = vmatprep.subr.mxu0 0.0
          %2109 = vmatpush1.msra.mxu0 0.0
          %2110 = vmatprep.subr.mxu0 0.0
          %2111 = vmatpush1.msra.mxu0 0.0
          %2112 = vmatprep.subr.mxu0 0.0
          %2113 = vmatpush1.msra.mxu0 0.0
          %2114 = vmatprep.subr.mxu0 0.0
          %2115 = vmatpush1.msra.mxu0 0.0
          %2116 = vmatprep.subr.mxu0 0.0
          %2117 = vmatpush1.msra.mxu0 0.0
          %2118 = vmatprep.subr.mxu0 0.0
          %2119 = vmatpush1.msra.mxu0 0.0
          %2120 = vmatprep.subr.mxu0 0.0
          %2121 = vmatpush1.msra.mxu0 0.0
          %2122 = vmatprep.subr.mxu0 0.0
          %2123 = vmatpush1.msra.mxu0 0.0
          %2124 = vmatprep.subr.mxu0 0.0
          %2125 = vmatpush1.msra.mxu0 0.0
          %2126 = vmatprep.subr.mxu0 0.0
          %2127 = vmatpush1.msra.mxu0 0.0
          %2128 = vmatprep.subr.mxu0 0.0
          %2129 = vmatpush1.msra.mxu0 0.0
          %2130 = vmatprep.subr.mxu0 0.0
          %2131 = vmatpush1.msra.mxu0 0.0
          %2132 = vmatprep.subr.mxu0 0.0
          %2133 = vmatpush1.msra.mxu0 0.0
          %2134 = vmatprep.subr.mxu0 0.0
          %2135 = vmatpush1.msra.mxu0 0.0
          %2136 = vmatprep.subr.mxu0 0.0
          %2137 = vmatpush1.msra.mxu0 0.0
          %2138 = vmatprep.subr.mxu0 0.0
          %2139 = vmatpush1.msra.mxu0 0.0
          %2140 = vmatprep.subr.mxu0 0.0
          %2141 = vmatpush1.msra.mxu0 0.0
          %2142 = vmatprep.subr.mxu0 0.0
          %2143 = vmatpush1.msra.mxu0 0.0
          %2144 = vmatprep.mubr.f32.mxu0 0.0
          %2145 = vmatmul.mubr.f32.gmra.mrb[0].mxu0 %v1766
          %v2146 = vpop.f32.mrb[0].mxu0
          %v2147 = vadd.f32 0.0, %v2146
          %v2148 = vpop.f32.mrb[0].mxu0
          %2149 = vmatprep.mubr.f32.mxu0 0.0
          %2150 = vmatmul.mubr.f32.gmra.mrb[0].mxu0 %v1769
          %v2151 = vpop.f32.mrb[0].mxu0
          %v2152 = vadd.f32 0.0, %v2151
          %v2153 = vpop.f32.mrb[0].mxu0
          %2154 = vdwg.mxu0
          %v2156 = vsel %vm1187, %v2147, 0
          %v2159 = vsel %vm1187, %v2152, 0
          %2161 = vmatprep.subr.mxu0 0.0
          %2162 = vmatpush1.msra.mxu0 %v1854
          %2163 = vmatprep.subr.mxu0 0.0
          %2164 = vmatpush1.msra.mxu0 0.0
          %2165 = vmatprep.subr.mxu0 0.0
          %2166 = vmatpush1.msra.mxu0 0.0
          %2167 = vmatprep.subr.mxu0 0.0
          %2168 = vmatpush1.msra.mxu0 0.0
          %2169 = vmatprep.subr.mxu0 0.0
          %2170 = vmatpush1.msra.mxu0 0.0
          %2171 = vmatprep.subr.mxu0 0.0
          %2172 = vmatpush1.msra.mxu0 0.0
          %2173 = vmatprep.subr.mxu0 0.0
          %2174 = vmatpush1.msra.mxu0 0.0
          %2175 = vmatprep.subr.mxu0 0.0
          %2176 = vmatpush1.msra.mxu0 0.0
          %2177 = vmatprep.subr.mxu0 0.0
          %2178 = vmatpush1.msra.mxu0 0.0
          %2179 = vmatprep.subr.mxu0 0.0
          %2180 = vmatpush1.msra.mxu0 0.0
          %2181 = vmatprep.subr.mxu0 0.0
          %2182 = vmatpush1.msra.mxu0 0.0
          %2183 = vmatprep.subr.mxu0 0.0
          %2184 = vmatpush1.msra.mxu0 0.0
          %2185 = vmatprep.subr.mxu0 0.0
          %2186 = vmatpush1.msra.mxu0 0.0
          %2187 = vmatprep.subr.mxu0 0.0
          %2188 = vmatpush1.msra.mxu0 0.0
          %2189 = vmatprep.subr.mxu0 0.0
          %2190 = vmatpush1.msra.mxu0 0.0
          %2191 = vmatprep.subr.mxu0 0.0
          %2192 = vmatpush1.msra.mxu0 0.0
          %2193 = vmatprep.subr.mxu0 0.0
          %2194 = vmatpush1.msra.mxu0 0.0
          %2195 = vmatprep.subr.mxu0 0.0
          %2196 = vmatpush1.msra.mxu0 0.0
          %2197 = vmatprep.subr.mxu0 0.0
          %2198 = vmatpush1.msra.mxu0 0.0
          %2199 = vmatprep.subr.mxu0 0.0
          %2200 = vmatpush1.msra.mxu0 0.0
          %2201 = vmatprep.subr.mxu0 0.0
          %2202 = vmatpush1.msra.mxu0 0.0
          %2203 = vmatprep.subr.mxu0 0.0
          %2204 = vmatpush1.msra.mxu0 0.0
          %2205 = vmatprep.subr.mxu0 0.0
          %2206 = vmatpush1.msra.mxu0 0.0
          %2207 = vmatprep.subr.mxu0 0.0
          %2208 = vmatpush1.msra.mxu0 0.0
          %2209 = vmatprep.subr.mxu0 0.0
          %2210 = vmatpush1.msra.mxu0 0.0
          %2211 = vmatprep.subr.mxu0 0.0
          %2212 = vmatpush1.msra.mxu0 0.0
          %2213 = vmatprep.subr.mxu0 0.0
          %2214 = vmatpush1.msra.mxu0 0.0
          %2215 = vmatprep.subr.mxu0 0.0
          %2216 = vmatpush1.msra.mxu0 0.0
          %2217 = vmatprep.subr.mxu0 0.0
          %2218 = vmatpush1.msra.mxu0 0.0
          %2219 = vmatprep.subr.mxu0 0.0
          %2220 = vmatpush1.msra.mxu0 0.0
          %2221 = vmatprep.subr.mxu0 0.0
          %2222 = vmatpush1.msra.mxu0 0.0
          %2223 = vmatprep.subr.mxu0 0.0
          %2224 = vmatpush1.msra.mxu0 0.0
          %2225 = vmatprep.mubr.f32.mxu0 0.0
          %2226 = vmatmul.mubr.f32.gmra.mrb[0].mxu0 %v2156
          %v2227 = vpop.f32.mrb[0].mxu0
          %v2228 = vadd.f32 1e-05, %v2227
          %v2229 = vpop.f32.mrb[0].mxu0
          %2230 = vmatprep.mubr.f32.mxu0 0.0
          %2231 = vmatmul.mubr.f32.gmra.mrb[0].mxu0 %v2159
          %v2232 = vpop.f32.mrb[0].mxu0
          %v2233 = vadd.f32 1e-05, %v2232
          %v2234 = vpop.f32.mrb[0].mxu0
          %2235 = vdwg.mxu0
          %v2236 = vrsqrt.pop %v2228
          %v2237 = vrsqrt.pop %v2233
          %v2238 = vmul.f32 %v1931, %v2236
          %v2239 = vmul.f32 %v1932, %v2237
          %2240 = vst [vmem:[%s372] sm:$0xff] %v2238
          %2241 = vst [vmem:[%s372 + $0x8] sm:$0xff] %v2239
        $region64: #{tpu_custom_call.1} parent=55 // pred_fallthru
          _
        %s2242 = sand.u32 %s254, 1
        %s2243 = scalar_lea.sflag [#allocation8], %s2242
        %s2244 = sand.u32 %s254, 1
        %s2245 = smul.addr %s2244, 16
        %s2246 = scalar_lea.vmem [#allocation7], %s2245
        // Predicated region
        $region65: #{tpu_custom_call.1} parent=55 // pred_check
          %p2247 = pneg %p264
        $region66: #{tpu_custom_call.1} parent=55 // pred_check_branch
          %2249 = sbr.rel (%p2247) target = $region68
        $region67: #{tpu_custom_call.1} parent=55 // pred_region
          %s2251 = ssub.s32 256, 256
          %2252 = vsyncadd %s2243, %s2251
          %s2253 = smul.addr %s34, 128
          %s2254 = scalar_lea.hbm %s10, %s2253
          %s2255 = sshll.u32 %s2246, 4
          %s2256 = int_to_ptr.vmem [resolvable:$true] %s2255
          %2261 = dma.vmem_to_hbm [thread:$0]  %s2256, 256, %s2254, %s2243, 128, 256, 8
        $region68: #{tpu_custom_call.1} parent=55 // pred_fallthru
          _
      $region56: #{tpu_custom_call.1} parent=5 // pred_fallthru
        _
      %p2262 = scmp.le.s32.totalorder 2, %s25
      // Predicated region
      $region69: #{tpu_custom_call.1} parent=5 // pred_check
        %p2263 = pneg %p2262
      $region70: #{tpu_custom_call.1} parent=5 // pred_check_branch
        %2265 = sbr.rel (%p2263) target = $region72
      $region71: #{tpu_custom_call.1} parent=5 // pred_region
        %s2266 = ssub.s32 %s25, 2
        // Predicated region
        $region73: #{tpu_custom_call.1} parent=71 // pred_check
          %p2267 = pneg %p270
        $region74: #{tpu_custom_call.1} parent=71 // pred_check_branch
          %2269 = sbr.rel (%p2267) target = $region76
        $region75: #{tpu_custom_call.1} parent=71 // pred_region
          %s2270 = sand.u32 %s255, 1
          %s2271 = scalar_lea.sflag [#allocation8], %s2270
          %s2272 = sand.u32 %s255, 1
          %s2273 = smul.addr %s2272, 16
          %s2274 = scalar_lea.vmem [#allocation7], %s2273
          %2275 = dma.done %s2271, 256
        $region76: #{tpu_custom_call.1} parent=71 // pred_fallthru
          _
      $region72: #{tpu_custom_call.1} parent=5 // pred_fallthru
        _
    $region6: #{tpu_custom_call.1} parent=1 // loop_footer
      %s29 = sadd.s32 1, %s25
    $region7: #{tpu_custom_call.1} parent=1 // loop_footer_branch
      %24 = sbr.rel target = $region3
    $region8: #{tpu_custom_call.1} parent=1 // loop_exit
      _
    %2276 = vsyncpa [#allocation8], 1
    %s2277 = scalar_lea.sflag [#allocation8], 1
    %2278 = vsyncpa %s2277, 1

</llo_original>
